<compile_context>
chip_gen: v6e
topology: v6e:2x2x1
jax: 0.10.0
libtpu: 0.0.40
codegen_flags: <defaults>
</compile_context>

<pallas_src>
import numpy as np
import jax
import jax.numpy as jnp
from jax.experimental import pallas as pl
from jax.experimental.pallas import tpu as pltpu

KERNEL_SIZE = 3   # conv kernel size, padding=1 ("same")
POOL1 = 8         # AdaptiveMaxPool1d(8)
POOL2 = 4         # AdaptiveMaxPool1d(4)
C1_OUT = 64
C2_OUT = 32


def _pool_bins(length, out_size):
    """AdaptiveMaxPool1d bin boundaries (start, end) — identical to PyTorch."""
    return [((i * length) // out_size, -(-((i + 1) * length) // out_size))
            for i in range(out_size)]


def _make_kernel(L, nh):
    bins1 = _pool_bins(L, POOL1)
    bins2 = _pool_bins(POOL1, POOL2)

    def kernel(xw_ref, w1_ref, b1_ref, w2_ref, b2_ref, wfc_ref, bfc_ref,
               out_ref, h1_scr, p1_scr, h2_scr):
        f32 = jnp.float32
        bf16 = jnp.bfloat16

        # ---------- conv1 ('same') on the branch-fused (2L, Cin) bf16 tile ----------
        # Shifted copies from static Ref slices; zero rows at both sequence
        # boundaries and at the x|wt seam.  Taps k=0/1/2 use in[t-1]/in[t]/in[t+1].
        zi = jnp.zeros((1, xw_ref.shape[1]), bf16)
        h_c = xw_ref[...]
        h_p = jnp.concatenate(
            [zi, xw_ref[0:L - 1, :], zi, xw_ref[L:2 * L - 1, :]], axis=0)
        h_n = jnp.concatenate(
            [xw_ref[1:L, :], zi, xw_ref[L + 1:2 * L, :], zi], axis=0)

        acc1 = jnp.dot(h_p, w1_ref[0], preferred_element_type=f32)
        acc1 = acc1 + jnp.dot(h_c, w1_ref[1], preferred_element_type=f32)
        acc1 = acc1 + jnp.dot(h_n, w1_ref[2], preferred_element_type=f32)
        h1_scr[...] = jnp.maximum(acc1 + b1_ref[...], 0.0)          # (2L, 64) f32

        # ---------- adaptive max pool 1: static per-bin Ref slices ----------
        px = [jnp.max(h1_scr[s:e, :], axis=0, keepdims=True) for (s, e) in bins1]
        pw = [jnp.max(h1_scr[L + s:L + e, :], axis=0, keepdims=True)
              for (s, e) in bins1]
        p1_scr[...] = jnp.concatenate(px + pw, axis=0)               # (16, 64) f32

        # ---------- conv2 ('same') on fused (2*POOL1, 64) ----------
        z1 = jnp.zeros((1, C1_OUT), f32)
        g_c = p1_scr[...]
        g_p = jnp.concatenate(
            [z1, p1_scr[0:POOL1 - 1, :], z1, p1_scr[POOL1:2 * POOL1 - 1, :]], axis=0)
        g_n = jnp.concatenate(
            [p1_scr[1:POOL1, :], z1, p1_scr[POOL1 + 1:2 * POOL1, :], z1], axis=0)

        acc2 = jnp.dot(g_p.astype(bf16), w2_ref[0], preferred_element_type=f32)
        acc2 = acc2 + jnp.dot(g_c.astype(bf16), w2_ref[1], preferred_element_type=f32)
        acc2 = acc2 + jnp.dot(g_n.astype(bf16), w2_ref[2], preferred_element_type=f32)
        h2_scr[...] = jnp.maximum(acc2 + b2_ref[...], 0.0)           # (16, 32) f32

        # ---------- adaptive max pool 2 + flatten ----------
        # Time-major concat; wfc is pre-permuted to match torch's channel-major view.
        qx = [jnp.max(h2_scr[s:e, :], axis=0, keepdims=True) for (s, e) in bins2]
        qw = [jnp.max(h2_scr[POOL1 + s:POOL1 + e, :], axis=0, keepdims=True)
              for (s, e) in bins2]
        flat = jnp.concatenate([jnp.concatenate(qx, axis=1),
                                jnp.concatenate(qw, axis=1)], axis=0)  # (2, 128)

        # ---------- fc1: one MXU matmul for both branches ----------
        feats = jnp.dot(flat.astype(bf16), wfc_ref[...],
                        preferred_element_type=f32) + bfc_ref[...]     # (2, nh)

        # diff row fx - fw without row slicing: signed sublane reduce
        sgn = jnp.where(jax.lax.broadcasted_iota(jnp.int32, (2, 1), 0) == 0,
                        1.0, -1.0)
        diff = jnp.sum(feats * sgn, axis=0, keepdims=True)             # (1, nh)
        out_ref[...] = jnp.concatenate([feats, diff], axis=0)          # (3, nh)

    return kernel


def _full_spec(arr):
    n = arr.ndim
    return pl.BlockSpec(arr.shape, lambda b, n=n: (0,) * n)


@jax.jit
def ncnn_forward_batched(x, wt_x, w1, b1, w2, b2, wfc, bfc):
    """x, wt_x: (B, L, c_nfeat) time-major.  Params are torch-shaped.
    Returns (B, 3*c_nhidden) = [fc(x) | fc(wt_x) | fc(x) - fc(wt_x)] per sample."""
    B, L, cin = x.shape
    nh = wfc.shape[0]

    # branch-fused input: x occupies rows 0..L-1, wt_x rows L..2L-1 (bf16 DMA)
    xw = jnp.concatenate([x, wt_x], axis=1).astype(jnp.bfloat16)      # (B, 2L, Cin)

    # rearrange params to kernel layout (plain-JAX glue)
    w1_k = jnp.transpose(w1, (2, 1, 0)).astype(jnp.bfloat16)          # (3, Cin, 64)
    w2_k = jnp.transpose(w2, (2, 1, 0)).astype(jnp.bfloat16)          # (3, 64, 32)
    wfc_k = (jnp.transpose(wfc.reshape(nh, C2_OUT, POOL2), (2, 1, 0))
             .reshape(POOL2 * C2_OUT, nh).astype(jnp.bfloat16))       # (128, nh)
    b1_k = b1.reshape(1, -1).astype(jnp.float32)
    b2_k = b2.reshape(1, -1).astype(jnp.float32)
    bfc_k = bfc.reshape(1, -1).astype(jnp.float32)

    kernel = _make_kernel(L, nh)

    out = pl.pallas_call(
        kernel,
        out_shape=jax.ShapeDtypeStruct((B, 3, nh), jnp.float32),
        grid=(B,),
        in_specs=[
            pl.BlockSpec((None, 2 * L, cin), lambda b: (b, 0, 0)),
            _full_spec(w1_k), _full_spec(b1_k),
            _full_spec(w2_k), _full_spec(b2_k),
            _full_spec(wfc_k), _full_spec(bfc_k),
        ],
        out_specs=pl.BlockSpec((None, 3, nh), lambda b: (b, 0, 0)),
        scratch_shapes=[
            pltpu.VMEM((2 * L, C1_OUT), jnp.float32),
            pltpu.VMEM((2 * POOL1, C1_OUT), jnp.float32),
            pltpu.VMEM((2 * POOL1, C2_OUT), jnp.float32),
        ],
        compiler_params=pltpu.CompilerParams(
            dimension_semantics=("parallel",)),
    )(xw, w1_k, b1_k, w2_k, b2_k, wfc_k, bfc_k)

    # rows per sample are [fx | fw | fx - fw] -> flatten like torch.cat(dim=1)
    return out.reshape(B, 3 * nh)


# ------------------------------ NumPy reference ------------------------------

def ref_forward_np(x, wt, params):
    w1, b1, w2, b2, wfc, bfc = [np.asarray(p, np.float64) for p in params]

    def conv1d(h_cl, w, b):                     # h_cl: (Cin, L), torch layout
        cout = w.shape[0]
        L = h_cl.shape[1]
        hp = np.pad(h_cl, ((0, 0), (1, 1)))
        out = np.zeros((cout, L))
        for k in range(KERNEL_SIZE):
            out += w[:, :, k] @ hp[:, k:k + L]
        return out + b[:, None]

    def pool(h_cl, O):
        L = h_cl.shape[1]
        cols = []
        for i in range(O):
            s = (i * L) // O
            e = -(-((i + 1) * L) // O)
            cols.append(h_cl[:, s:e].max(axis=1, keepdims=True))
        return np.concatenate(cols, axis=1)

    def branch(inp):                            # inp: (L, Cin)
        h = np.asarray(inp, np.float64).T
        h = np.maximum(conv1d(h, w1, b1), 0.0)
        h = pool(h, POOL1)
        h = np.maximum(conv1d(h, w2, b2), 0.0)
        h = pool(h, POOL2)
        flat = h.reshape(1, -1)                 # channel-major, like torch .view
        return flat @ wfc.T + bfc[None, :]

    fx = branch(x)
    fw = branch(wt)
    return np.concatenate([fx, fw, fx - fw], axis=1)


# ------------------------------ main ------------------------------

if __name__ == "__main__":
    B, L, c_nfeat, c_nhidden = 2, 16, 8, 32   # dropout arg of NCNN is unused in forward

    key = jax.random.PRNGKey(0)
    ks = jax.random.split(key, 8)
    x = jax.random.normal(ks[0], (B, L, c_nfeat), jnp.float32)
    wt_x = jax.random.normal(ks[1], (B, L, c_nfeat), jnp.float32)

    # deterministic synthetic parameters (torch shapes)
    w1 = jax.random.normal(ks[2], (C1_OUT, c_nfeat, KERNEL_SIZE), jnp.float32) * 0.2
    b1 = jax.random.normal(ks[3], (C1_OUT,), jnp.float32) * 0.1
    w2 = jax.random.normal(ks[4], (C2_OUT, C1_OUT, KERNEL_SIZE), jnp.float32) * 0.1
    b2 = jax.random.normal(ks[5], (C2_OUT,), jnp.float32) * 0.1
    wfc = jax.random.normal(ks[6], (c_nhidden, C2_OUT * POOL2), jnp.float32) * 0.1
    bfc = jax.random.normal(ks[7], (c_nhidden,), jnp.float32) * 0.1

    out = ncnn_forward_batched(x, wt_x, w1, b1, w2, b2, wfc, bfc)
    out = jax.block_until_ready(out)

    params_np = [np.asarray(p) for p in (w1, b1, w2, b2, wfc, bfc)]
    ref = np.concatenate(
        [ref_forward_np(np.asarray(x[b]), np.asarray(wt_x[b]), params_np)
         for b in range(B)], axis=0).astype(np.float32)

    # bf16 MXU matmuls (f32 accumulation) vs f64 reference -> loosened tolerance
    np.testing.assert_allclose(np.asarray(out), ref, rtol=2e-2, atol=2e-2)
    print("KERNEL_OK")
</pallas_src>

<mosaic_0001>
module attributes {stable_mosaic.version = 11 : i64} {
  func.func @kernel(%arg0: i32, %arg1: memref<1x32x8xbf16, #tpu.memory_space<vmem>>, %arg2: memref<3x8x64xbf16, #tpu.memory_space<vmem>>, %arg3: memref<1x64xf32, #tpu.memory_space<vmem>>, %arg4: memref<3x64x32xbf16, #tpu.memory_space<vmem>>, %arg5: memref<1x32xf32, #tpu.memory_space<vmem>>, %arg6: memref<128x32xbf16, #tpu.memory_space<vmem>>, %arg7: memref<1x32xf32, #tpu.memory_space<vmem>>, %arg8: memref<1x3x32xf32, #tpu.memory_space<vmem>>, %arg9: memref<32x64xf32, #tpu.memory_space<vmem>>, %arg10: memref<16x64xf32, #tpu.memory_space<vmem>>, %arg11: memref<16x32xf32, #tpu.memory_space<vmem>>) attributes {dimension_semantics = [#tpu.dimension_semantics<parallel>], iteration_bounds = array<i64: 2>, scalar_prefetch = 0 : i64, scratch_operands = 3 : i64, tpu.core_type = #tpu.core_type<tc>, window_params = [{transform_indices = @transform_0, window_bounds = array<i64: 1, 32, 8>}, {pipeline_mode = #tpu.pipeline_mode<synchronous>, transform_indices = @transform_1, window_bounds = array<i64: 3, 8, 64>}, {pipeline_mode = #tpu.pipeline_mode<synchronous>, transform_indices = @transform_2, window_bounds = array<i64: 1, 64>}, {pipeline_mode = #tpu.pipeline_mode<synchronous>, transform_indices = @transform_3, window_bounds = array<i64: 3, 64, 32>}, {pipeline_mode = #tpu.pipeline_mode<synchronous>, transform_indices = @transform_4, window_bounds = array<i64: 1, 32>}, {pipeline_mode = #tpu.pipeline_mode<synchronous>, transform_indices = @transform_5, window_bounds = array<i64: 128, 32>}, {pipeline_mode = #tpu.pipeline_mode<synchronous>, transform_indices = @transform_6, window_bounds = array<i64: 1, 32>}, {transform_indices = @transform_7, window_bounds = array<i64: 1, 3, 32>}]} {
    %cst = arith.constant 0.000000e+00 : bf16
    %0 = vector.broadcast %cst : bf16 to vector<1x8xbf16>
    %c0 = arith.constant 0 : index
    %c0_0 = arith.constant 0 : index
    %c0_1 = arith.constant 0 : index
    %1 = vector.load %arg1[%c0, %c0_0, %c0_1] : memref<1x32x8xbf16, #tpu.memory_space<vmem>>, vector<1x32x8xbf16>
    %2 = vector.shape_cast %1 : vector<1x32x8xbf16> to vector<32x8xbf16>
    %c0_2 = arith.constant 0 : index
    %c0_3 = arith.constant 0 : index
    %c0_4 = arith.constant 0 : index
    %3 = vector.load %arg1[%c0_2, %c0_3, %c0_4] : memref<1x32x8xbf16, #tpu.memory_space<vmem>>, vector<1x15x8xbf16>
    %4 = vector.shape_cast %3 : vector<1x15x8xbf16> to vector<15x8xbf16>
    %c0_5 = arith.constant 0 : index
    %c16 = arith.constant 16 : index
    %c0_6 = arith.constant 0 : index
    %5 = vector.load %arg1[%c0_5, %c16, %c0_6] : memref<1x32x8xbf16, #tpu.memory_space<vmem>>, vector<1x15x8xbf16>
    %6 = vector.shape_cast %5 : vector<1x15x8xbf16> to vector<15x8xbf16>
    %7 = tpu.concatenate %0, %4, %0, %6 in 0 : vector<1x8xbf16>, vector<15x8xbf16>, vector<1x8xbf16>, vector<15x8xbf16> -> vector<32x8xbf16>
    %c0_7 = arith.constant 0 : index
    %c1 = arith.constant 1 : index
    %c0_8 = arith.constant 0 : index
    %8 = vector.load %arg1[%c0_7, %c1, %c0_8] : memref<1x32x8xbf16, #tpu.memory_space<vmem>>, vector<1x15x8xbf16>
    %9 = vector.shape_cast %8 : vector<1x15x8xbf16> to vector<15x8xbf16>
    %c0_9 = arith.constant 0 : index
    %c17 = arith.constant 17 : index
    %c0_10 = arith.constant 0 : index
    %10 = vector.load %arg1[%c0_9, %c17, %c0_10] : memref<1x32x8xbf16, #tpu.memory_space<vmem>>, vector<1x15x8xbf16>
    %11 = vector.shape_cast %10 : vector<1x15x8xbf16> to vector<15x8xbf16>
    %12 = tpu.concatenate %9, %0, %11, %0 in 0 : vector<15x8xbf16>, vector<1x8xbf16>, vector<15x8xbf16>, vector<1x8xbf16> -> vector<32x8xbf16>
    %c0_11 = arith.constant 0 : index
    %c0_12 = arith.constant 0 : index
    %c0_13 = arith.constant 0 : index
    %13 = vector.load %arg2[%c0_11, %c0_12, %c0_13] : memref<3x8x64xbf16, #tpu.memory_space<vmem>>, vector<1x8x64xbf16>
    %14 = vector.shape_cast %13 : vector<1x8x64xbf16> to vector<8x64xbf16>
    %cst_14 = arith.constant dense<0.000000e+00> : vector<32x64xf32>
    %15 = tpu.matmul %7, %14, %cst_14 {dimension_numbers = #tpu.dot_dimension_numbers<[1], [0], [0], [1], [0, 0, 1, 1], [], []>} : vector<32x8xbf16>, vector<8x64xbf16>, vector<32x64xf32> -> vector<32x64xf32>
    %c1_15 = arith.constant 1 : index
    %c0_16 = arith.constant 0 : index
    %c0_17 = arith.constant 0 : index
    %16 = vector.load %arg2[%c1_15, %c0_16, %c0_17] : memref<3x8x64xbf16, #tpu.memory_space<vmem>>, vector<1x8x64xbf16>
    %17 = vector.shape_cast %16 : vector<1x8x64xbf16> to vector<8x64xbf16>
    %cst_18 = arith.constant dense<0.000000e+00> : vector<32x64xf32>
    %18 = tpu.matmul %2, %17, %cst_18 {dimension_numbers = #tpu.dot_dimension_numbers<[1], [0], [0], [1], [0, 0, 1, 1], [], []>} : vector<32x8xbf16>, vector<8x64xbf16>, vector<32x64xf32> -> vector<32x64xf32>
    %19 = arith.addf %15, %18 : vector<32x64xf32>
    %c2 = arith.constant 2 : index
    %c0_19 = arith.constant 0 : index
    %c0_20 = arith.constant 0 : index
    %20 = vector.load %arg2[%c2, %c0_19, %c0_20] : memref<3x8x64xbf16, #tpu.memory_space<vmem>>, vector<1x8x64xbf16>
    %21 = vector.shape_cast %20 : vector<1x8x64xbf16> to vector<8x64xbf16>
    %cst_21 = arith.constant dense<0.000000e+00> : vector<32x64xf32>
    %22 = tpu.matmul %12, %21, %cst_21 {dimension_numbers = #tpu.dot_dimension_numbers<[1], [0], [0], [1], [0, 0, 1, 1], [], []>} : vector<32x8xbf16>, vector<8x64xbf16>, vector<32x64xf32> -> vector<32x64xf32>
    %23 = arith.addf %19, %22 : vector<32x64xf32>
    %c0_22 = arith.constant 0 : index
    %c0_23 = arith.constant 0 : index
    %24 = vector.load %arg3[%c0_22, %c0_23] : memref<1x64xf32, #tpu.memory_space<vmem>>, vector<1x64xf32>
    %25 = vector.broadcast %24 : vector<1x64xf32> to vector<32x64xf32>
    %26 = arith.addf %23, %25 : vector<32x64xf32>
    %cst_24 = arith.constant 0.000000e+00 : f32
    %27 = vector.broadcast %cst_24 : f32 to vector<32x64xf32>
    %28 = arith.maximumf %26, %27 : vector<32x64xf32>
    %c0_25 = arith.constant 0 : index
    %c0_26 = arith.constant 0 : index
    %29 = vector.load %arg9[%c0_25, %c0_26] : memref<32x64xf32, #tpu.memory_space<vmem>>, vector<32x64xf32>
    tpu.vector_store %arg9[%c0_25, %c0_26], %28 {strides = array<i32>} : memref<32x64xf32, #tpu.memory_space<vmem>>, vector<32x64xf32>,
    %c0_27 = arith.constant 0 : index
    %c0_28 = arith.constant 0 : index
    %30 = vector.load %arg9[%c0_27, %c0_28] : memref<32x64xf32, #tpu.memory_space<vmem>>, vector<2x64xf32>
    %cst_29 = arith.constant dense<0xFF800000> : vector<64xf32>
    %31 = vector.multi_reduction <maximumf>, %30, %cst_29 [0] : vector<2x64xf32> to vector<64xf32>
    %32 = vector.shape_cast %31 : vector<64xf32> to vector<1x64xf32>
    %c2_30 = arith.constant 2 : index
    %c0_31 = arith.constant 0 : index
    %33 = vector.load %arg9[%c2_30, %c0_31] : memref<32x64xf32, #tpu.memory_space<vmem>>, vector<2x64xf32>
    %cst_32 = arith.constant dense<0xFF800000> : vector<64xf32>
    %34 = vector.multi_reduction <maximumf>, %33, %cst_32 [0] : vector<2x64xf32> to vector<64xf32>
    %35 = vector.shape_cast %34 : vector<64xf32> to vector<1x64xf32>
    %c4 = arith.constant 4 : index
    %c0_33 = arith.constant 0 : index
    %36 = vector.load %arg9[%c4, %c0_33] : memref<32x64xf32, #tpu.memory_space<vmem>>, vector<2x64xf32>
    %cst_34 = arith.constant dense<0xFF800000> : vector<64xf32>
    %37 = vector.multi_reduction <maximumf>, %36, %cst_34 [0] : vector<2x64xf32> to vector<64xf32>
    %38 = vector.shape_cast %37 : vector<64xf32> to vector<1x64xf32>
    %c6 = arith.constant 6 : index
    %c0_35 = arith.constant 0 : index
    %39 = vector.load %arg9[%c6, %c0_35] : memref<32x64xf32, #tpu.memory_space<vmem>>, vector<2x64xf32>
    %cst_36 = arith.constant dense<0xFF800000> : vector<64xf32>
    %40 = vector.multi_reduction <maximumf>, %39, %cst_36 [0] : vector<2x64xf32> to vector<64xf32>
    %41 = vector.shape_cast %40 : vector<64xf32> to vector<1x64xf32>
    %c8 = arith.constant 8 : index
    %c0_37 = arith.constant 0 : index
    %42 = vector.load %arg9[%c8, %c0_37] : memref<32x64xf32, #tpu.memory_space<vmem>>, vector<2x64xf32>
    %cst_38 = arith.constant dense<0xFF800000> : vector<64xf32>
    %43 = vector.multi_reduction <maximumf>, %42, %cst_38 [0] : vector<2x64xf32> to vector<64xf32>
    %44 = vector.shape_cast %43 : vector<64xf32> to vector<1x64xf32>
    %c10 = arith.constant 10 : index
    %c0_39 = arith.constant 0 : index
    %45 = vector.load %arg9[%c10, %c0_39] : memref<32x64xf32, #tpu.memory_space<vmem>>, vector<2x64xf32>
    %cst_40 = arith.constant dense<0xFF800000> : vector<64xf32>
    %46 = vector.multi_reduction <maximumf>, %45, %cst_40 [0] : vector<2x64xf32> to vector<64xf32>
    %47 = vector.shape_cast %46 : vector<64xf32> to vector<1x64xf32>
    %c12 = arith.constant 12 : index
    %c0_41 = arith.constant 0 : index
    %48 = vector.load %arg9[%c12, %c0_41] : memref<32x64xf32, #tpu.memory_space<vmem>>, vector<2x64xf32>
    %cst_42 = arith.constant dense<0xFF800000> : vector<64xf32>
    %49 = vector.multi_reduction <maximumf>, %48, %cst_42 [0] : vector<2x64xf32> to vector<64xf32>
    %50 = vector.shape_cast %49 : vector<64xf32> to vector<1x64xf32>
    %c14 = arith.constant 14 : index
    %c0_43 = arith.constant 0 : index
    %51 = vector.load %arg9[%c14, %c0_43] : memref<32x64xf32, #tpu.memory_space<vmem>>, vector<2x64xf32>
    %cst_44 = arith.constant dense<0xFF800000> : vector<64xf32>
    %52 = vector.multi_reduction <maximumf>, %51, %cst_44 [0] : vector<2x64xf32> to vector<64xf32>
    %53 = vector.shape_cast %52 : vector<64xf32> to vector<1x64xf32>
    %c16_45 = arith.constant 16 : index
    %c0_46 = arith.constant 0 : index
    %54 = vector.load %arg9[%c16_45, %c0_46] : memref<32x64xf32, #tpu.memory_space<vmem>>, vector<2x64xf32>
    %cst_47 = arith.constant dense<0xFF800000> : vector<64xf32>
    %55 = vector.multi_reduction <maximumf>, %54, %cst_47 [0] : vector<2x64xf32> to vector<64xf32>
    %56 = vector.shape_cast %55 : vector<64xf32> to vector<1x64xf32>
    %c18 = arith.constant 18 : index
    %c0_48 = arith.constant 0 : index
    %57 = vector.load %arg9[%c18, %c0_48] : memref<32x64xf32, #tpu.memory_space<vmem>>, vector<2x64xf32>
    %cst_49 = arith.constant dense<0xFF800000> : vector<64xf32>
    %58 = vector.multi_reduction <maximumf>, %57, %cst_49 [0] : vector<2x64xf32> to vector<64xf32>
    %59 = vector.shape_cast %58 : vector<64xf32> to vector<1x64xf32>
    %c20 = arith.constant 20 : index
    %c0_50 = arith.constant 0 : index
    %60 = vector.load %arg9[%c20, %c0_50] : memref<32x64xf32, #tpu.memory_space<vmem>>, vector<2x64xf32>
    %cst_51 = arith.constant dense<0xFF800000> : vector<64xf32>
    %61 = vector.multi_reduction <maximumf>, %60, %cst_51 [0] : vector<2x64xf32> to vector<64xf32>
    %62 = vector.shape_cast %61 : vector<64xf32> to vector<1x64xf32>
    %c22 = arith.constant 22 : index
    %c0_52 = arith.constant 0 : index
    %63 = vector.load %arg9[%c22, %c0_52] : memref<32x64xf32, #tpu.memory_space<vmem>>, vector<2x64xf32>
    %cst_53 = arith.constant dense<0xFF800000> : vector<64xf32>
    %64 = vector.multi_reduction <maximumf>, %63, %cst_53 [0] : vector<2x64xf32> to vector<64xf32>
    %65 = vector.shape_cast %64 : vector<64xf32> to vector<1x64xf32>
    %c24 = arith.constant 24 : index
    %c0_54 = arith.constant 0 : index
    %66 = vector.load %arg9[%c24, %c0_54] : memref<32x64xf32, #tpu.memory_space<vmem>>, vector<2x64xf32>
    %cst_55 = arith.constant dense<0xFF800000> : vector<64xf32>
    %67 = vector.multi_reduction <maximumf>, %66, %cst_55 [0] : vector<2x64xf32> to vector<64xf32>
    %68 = vector.shape_cast %67 : vector<64xf32> to vector<1x64xf32>
    %c26 = arith.constant 26 : index
    %c0_56 = arith.constant 0 : index
    %69 = vector.load %arg9[%c26, %c0_56] : memref<32x64xf32, #tpu.memory_space<vmem>>, vector<2x64xf32>
    %cst_57 = arith.constant dense<0xFF800000> : vector<64xf32>
    %70 = vector.multi_reduction <maximumf>, %69, %cst_57 [0] : vector<2x64xf32> to vector<64xf32>
    %71 = vector.shape_cast %70 : vector<64xf32> to vector<1x64xf32>
    %c28 = arith.constant 28 : index
    %c0_58 = arith.constant 0 : index
    %72 = vector.load %arg9[%c28, %c0_58] : memref<32x64xf32, #tpu.memory_space<vmem>>, vector<2x64xf32>
    %cst_59 = arith.constant dense<0xFF800000> : vector<64xf32>
    %73 = vector.multi_reduction <maximumf>, %72, %cst_59 [0] : vector<2x64xf32> to vector<64xf32>
    %74 = vector.shape_cast %73 : vector<64xf32> to vector<1x64xf32>
    %c30 = arith.constant 30 : index
    %c0_60 = arith.constant 0 : index
    %75 = vector.load %arg9[%c30, %c0_60] : memref<32x64xf32, #tpu.memory_space<vmem>>, vector<2x64xf32>
    %cst_61 = arith.constant dense<0xFF800000> : vector<64xf32>
    %76 = vector.multi_reduction <maximumf>, %75, %cst_61 [0] : vector<2x64xf32> to vector<64xf32>
    %77 = vector.shape_cast %76 : vector<64xf32> to vector<1x64xf32>
    %78 = tpu.concatenate %32, %35, %38, %41, %44, %47, %50, %53, %56, %59, %62, %65, %68, %71, %74, %77 in 0 : vector<1x64xf32>, vector<1x64xf32>, vector<1x64xf32>, vector<1x64xf32>, vector<1x64xf32>, vector<1x64xf32>, vector<1x64xf32>, vector<1x64xf32>, vector<1x64xf32>, vector<1x64xf32>, vector<1x64xf32>, vector<1x64xf32>, vector<1x64xf32>, vector<1x64xf32>, vector<1x64xf32>, vector<1x64xf32> -> vector<16x64xf32>
    %c0_62 = arith.constant 0 : index
    %c0_63 = arith.constant 0 : index
    %79 = vector.load %arg10[%c0_62, %c0_63] : memref<16x64xf32, #tpu.memory_space<vmem>>, vector<16x64xf32>
    tpu.vector_store %arg10[%c0_62, %c0_63], %78 {strides = array<i32>} : memref<16x64xf32, #tpu.memory_space<vmem>>, vector<16x64xf32>,
    %cst_64 = arith.constant 0.000000e+00 : f32
    %80 = vector.broadcast %cst_64 : f32 to vector<1x64xf32>
    %c0_65 = arith.constant 0 : index
    %c0_66 = arith.constant 0 : index
    %81 = vector.load %arg10[%c0_65, %c0_66] : memref<16x64xf32, #tpu.memory_space<vmem>>, vector<16x64xf32>
    %c0_67 = arith.constant 0 : index
    %c0_68 = arith.constant 0 : index
    %82 = vector.load %arg10[%c0_67, %c0_68] : memref<16x64xf32, #tpu.memory_space<vmem>>, vector<7x64xf32>
    %c8_69 = arith.constant 8 : index
    %c0_70 = arith.constant 0 : index
    %83 = vector.load %arg10[%c8_69, %c0_70] : memref<16x64xf32, #tpu.memory_space<vmem>>, vector<7x64xf32>
    %84 = tpu.concatenate %80, %82, %80, %83 in 0 : vector<1x64xf32>, vector<7x64xf32>, vector<1x64xf32>, vector<7x64xf32> -> vector<16x64xf32>
    %c1_71 = arith.constant 1 : index
    %c0_72 = arith.constant 0 : index
    %85 = vector.load %arg10[%c1_71, %c0_72] : memref<16x64xf32, #tpu.memory_space<vmem>>, vector<7x64xf32>
    %c9 = arith.constant 9 : index
    %c0_73 = arith.constant 0 : index
    %86 = vector.load %arg10[%c9, %c0_73] : memref<16x64xf32, #tpu.memory_space<vmem>>, vector<7x64xf32>
    %87 = tpu.concatenate %85, %80, %86, %80 in 0 : vector<7x64xf32>, vector<1x64xf32>, vector<7x64xf32>, vector<1x64xf32> -> vector<16x64xf32>
    %88 = arith.truncf %84 : vector<16x64xf32> to vector<16x64xbf16>
    %c0_74 = arith.constant 0 : index
    %c0_75 = arith.constant 0 : index
    %c0_76 = arith.constant 0 : index
    %89 = vector.load %arg4[%c0_74, %c0_75, %c0_76] : memref<3x64x32xbf16, #tpu.memory_space<vmem>>, vector<1x64x32xbf16>
    %90 = vector.shape_cast %89 : vector<1x64x32xbf16> to vector<64x32xbf16>
    %cst_77 = arith.constant dense<0.000000e+00> : vector<16x32xf32>
    %91 = tpu.matmul %88, %90, %cst_77 {dimension_numbers = #tpu.dot_dimension_numbers<[1], [0], [0], [1], [0, 0, 1, 1], [], []>} : vector<16x64xbf16>, vector<64x32xbf16>, vector<16x32xf32> -> vector<16x32xf32>
    %92 = arith.truncf %81 : vector<16x64xf32> to vector<16x64xbf16>
    %c1_78 = arith.constant 1 : index
    %c0_79 = arith.constant 0 : index
    %c0_80 = arith.constant 0 : index
    %93 = vector.load %arg4[%c1_78, %c0_79, %c0_80] : memref<3x64x32xbf16, #tpu.memory_space<vmem>>, vector<1x64x32xbf16>
    %94 = vector.shape_cast %93 : vector<1x64x32xbf16> to vector<64x32xbf16>
    %cst_81 = arith.constant dense<0.000000e+00> : vector<16x32xf32>
    %95 = tpu.matmul %92, %94, %cst_81 {dimension_numbers = #tpu.dot_dimension_numbers<[1], [0], [0], [1], [0, 0, 1, 1], [], []>} : vector<16x64xbf16>, vector<64x32xbf16>, vector<16x32xf32> -> vector<16x32xf32>
    %96 = arith.addf %91, %95 : vector<16x32xf32>
    %97 = arith.truncf %87 : vector<16x64xf32> to vector<16x64xbf16>
    %c2_82 = arith.constant 2 : index
    %c0_83 = arith.constant 0 : index
    %c0_84 = arith.constant 0 : index
    %98 = vector.load %arg4[%c2_82, %c0_83, %c0_84] : memref<3x64x32xbf16, #tpu.memory_space<vmem>>, vector<1x64x32xbf16>
    %99 = vector.shape_cast %98 : vector<1x64x32xbf16> to vector<64x32xbf16>
    %cst_85 = arith.constant dense<0.000000e+00> : vector<16x32xf32>
    %100 = tpu.matmul %97, %99, %cst_85 {dimension_numbers = #tpu.dot_dimension_numbers<[1], [0], [0], [1], [0, 0, 1, 1], [], []>} : vector<16x64xbf16>, vector<64x32xbf16>, vector<16x32xf32> -> vector<16x32xf32>
    %101 = arith.addf %96, %100 : vector<16x32xf32>
    %c0_86 = arith.constant 0 : index
    %c0_87 = arith.constant 0 : index
    %102 = vector.load %arg5[%c0_86, %c0_87] : memref<1x32xf32, #tpu.memory_space<vmem>>, vector<1x32xf32>
    %103 = vector.broadcast %102 : vector<1x32xf32> to vector<16x32xf32>
    %104 = arith.addf %101, %103 : vector<16x32xf32>
    %cst_88 = arith.constant 0.000000e+00 : f32
    %105 = vector.broadcast %cst_88 : f32 to vector<16x32xf32>
    %106 = arith.maximumf %104, %105 : vector<16x32xf32>
    %c0_89 = arith.constant 0 : index
    %c0_90 = arith.constant 0 : index
    %107 = vector.load %arg11[%c0_89, %c0_90] : memref<16x32xf32, #tpu.memory_space<vmem>>, vector<16x32xf32>
    tpu.vector_store %arg11[%c0_89, %c0_90], %106 {strides = array<i32>} : memref<16x32xf32, #tpu.memory_space<vmem>>, vector<16x32xf32>,
    %c0_91 = arith.constant 0 : index
    %c0_92 = arith.constant 0 : index
    %108 = vector.load %arg11[%c0_91, %c0_92] : memref<16x32xf32, #tpu.memory_space<vmem>>, vector<2x32xf32>
    %cst_93 = arith.constant dense<0xFF800000> : vector<32xf32>
    %109 = vector.multi_reduction <maximumf>, %108, %cst_93 [0] : vector<2x32xf32> to vector<32xf32>
    %110 = vector.shape_cast %109 : vector<32xf32> to vector<1x32xf32>
    %c2_94 = arith.constant 2 : index
    %c0_95 = arith.constant 0 : index
    %111 = vector.load %arg11[%c2_94, %c0_95] : memref<16x32xf32, #tpu.memory_space<vmem>>, vector<2x32xf32>
    %cst_96 = arith.constant dense<0xFF800000> : vector<32xf32>
    %112 = vector.multi_reduction <maximumf>, %111, %cst_96 [0] : vector<2x32xf32> to vector<32xf32>
    %113 = vector.shape_cast %112 : vector<32xf32> to vector<1x32xf32>
    %c4_97 = arith.constant 4 : index
    %c0_98 = arith.constant 0 : index
    %114 = vector.load %arg11[%c4_97, %c0_98] : memref<16x32xf32, #tpu.memory_space<vmem>>, vector<2x32xf32>
    %cst_99 = arith.constant dense<0xFF800000> : vector<32xf32>
    %115 = vector.multi_reduction <maximumf>, %114, %cst_99 [0] : vector<2x32xf32> to vector<32xf32>
    %116 = vector.shape_cast %115 : vector<32xf32> to vector<1x32xf32>
    %c6_100 = arith.constant 6 : index
    %c0_101 = arith.constant 0 : index
    %117 = vector.load %arg11[%c6_100, %c0_101] : memref<16x32xf32, #tpu.memory_space<vmem>>, vector<2x32xf32>
    %cst_102 = arith.constant dense<0xFF800000> : vector<32xf32>
    %118 = vector.multi_reduction <maximumf>, %117, %cst_102 [0] : vector<2x32xf32> to vector<32xf32>
    %119 = vector.shape_cast %118 : vector<32xf32> to vector<1x32xf32>
    %c8_103 = arith.constant 8 : index
    %c0_104 = arith.constant 0 : index
    %120 = vector.load %arg11[%c8_103, %c0_104] : memref<16x32xf32, #tpu.memory_space<vmem>>, vector<2x32xf32>
    %cst_105 = arith.constant dense<0xFF800000> : vector<32xf32>
    %121 = vector.multi_reduction <maximumf>, %120, %cst_105 [0] : vector<2x32xf32> to vector<32xf32>
    %122 = vector.shape_cast %121 : vector<32xf32> to vector<1x32xf32>
    %c10_106 = arith.constant 10 : index
    %c0_107 = arith.constant 0 : index
    %123 = vector.load %arg11[%c10_106, %c0_107] : memref<16x32xf32, #tpu.memory_space<vmem>>, vector<2x32xf32>
    %cst_108 = arith.constant dense<0xFF800000> : vector<32xf32>
    %124 = vector.multi_reduction <maximumf>, %123, %cst_108 [0] : vector<2x32xf32> to vector<32xf32>
    %125 = vector.shape_cast %124 : vector<32xf32> to vector<1x32xf32>
    %c12_109 = arith.constant 12 : index
    %c0_110 = arith.constant 0 : index
    %126 = vector.load %arg11[%c12_109, %c0_110] : memref<16x32xf32, #tpu.memory_space<vmem>>, vector<2x32xf32>
    %cst_111 = arith.constant dense<0xFF800000> : vector<32xf32>
    %127 = vector.multi_reduction <maximumf>, %126, %cst_111 [0] : vector<2x32xf32> to vector<32xf32>
    %128 = vector.shape_cast %127 : vector<32xf32> to vector<1x32xf32>
    %c14_112 = arith.constant 14 : index
    %c0_113 = arith.constant 0 : index
    %129 = vector.load %arg11[%c14_112, %c0_113] : memref<16x32xf32, #tpu.memory_space<vmem>>, vector<2x32xf32>
    %cst_114 = arith.constant dense<0xFF800000> : vector<32xf32>
    %130 = vector.multi_reduction <maximumf>, %129, %cst_114 [0] : vector<2x32xf32> to vector<32xf32>
    %131 = vector.shape_cast %130 : vector<32xf32> to vector<1x32xf32>
    %132 = tpu.concatenate %110, %113, %116, %119 in 1 : vector<1x32xf32>, vector<1x32xf32>, vector<1x32xf32>, vector<1x32xf32> -> vector<1x128xf32>
    %133 = tpu.concatenate %122, %125, %128, %131 in 1 : vector<1x32xf32>, vector<1x32xf32>, vector<1x32xf32>, vector<1x32xf32> -> vector<1x128xf32>
    %134 = tpu.concatenate %132, %133 in 0 : vector<1x128xf32>, vector<1x128xf32> -> vector<2x128xf32>
    %135 = arith.truncf %134 : vector<2x128xf32> to vector<2x128xbf16>
    %c0_115 = arith.constant 0 : index
    %c0_116 = arith.constant 0 : index
    %136 = vector.load %arg6[%c0_115, %c0_116] : memref<128x32xbf16, #tpu.memory_space<vmem>>, vector<128x32xbf16>
    %cst_117 = arith.constant dense<0.000000e+00> : vector<2x32xf32>
    %137 = tpu.matmul %135, %136, %cst_117 {dimension_numbers = #tpu.dot_dimension_numbers<[1], [0], [0], [1], [0, 0, 1, 1], [], []>} : vector<2x128xbf16>, vector<128x32xbf16>, vector<2x32xf32> -> vector<2x32xf32>
    %c0_118 = arith.constant 0 : index
    %c0_119 = arith.constant 0 : index
    %138 = vector.load %arg7[%c0_118, %c0_119] : memref<1x32xf32, #tpu.memory_space<vmem>>, vector<1x32xf32>
    %139 = vector.broadcast %138 : vector<1x32xf32> to vector<2x32xf32>
    %140 = arith.addf %137, %139 : vector<2x32xf32>
    %141 = tpu.iota {dimensions = array<i32: 0>} : vector<2x1xi32>
    %c0_i32 = arith.constant 0 : i32
    %142 = vector.broadcast %c0_i32 : i32 to vector<2x1xi32>
    %143 = arith.cmpi eq, %141, %142 : vector<2x1xi32>
    %cst_120 = arith.constant 1.000000e+00 : f32
    %cst_121 = arith.constant -1.000000e+00 : f32
    %144 = vector.broadcast %cst_120 : f32 to vector<2x1xf32>
    %145 = vector.broadcast %cst_121 : f32 to vector<2x1xf32>
    %146 = arith.select %143, %144, %145 : vector<2x1xi1>, vector<2x1xf32>
    %147 = vector.broadcast %146 : vector<2x1xf32> to vector<2x32xf32>
    %148 = arith.mulf %140, %147 : vector<2x32xf32>
    %cst_122 = arith.constant dense<0.000000e+00> : vector<32xf32>
    %149 = vector.multi_reduction <add>, %148, %cst_122 [0] : vector<2x32xf32> to vector<32xf32>
    %150 = vector.shape_cast %149 : vector<32xf32> to vector<1x32xf32>
    %151 = tpu.concatenate %140, %150 in 0 : vector<2x32xf32>, vector<1x32xf32> -> vector<3x32xf32>
    %c0_123 = arith.constant 0 : index
    %c0_124 = arith.constant 0 : index
    %c0_125 = arith.constant 0 : index
    %152 = vector.load %arg8[%c0_123, %c0_124, %c0_125] : memref<1x3x32xf32, #tpu.memory_space<vmem>>, vector<1x3x32xf32>
    %153 = vector.shape_cast %152 : vector<1x3x32xf32> to vector<3x32xf32>
    %154 = vector.shape_cast %151 : vector<3x32xf32> to vector<1x3x32xf32>
    tpu.vector_store %arg8[%c0_123, %c0_124, %c0_125], %154 {strides = array<i32>} : memref<1x3x32xf32, #tpu.memory_space<vmem>>, vector<1x3x32xf32>,
    return
  }
  func.func @transform_0(%arg0: i32) -> (i32, i32, i32) {
    %c0_i32 = arith.constant 0 : i32
    %c0_i32_0 = arith.constant 0 : i32
    %c0_i32_1 = arith.constant 0 : i32
    return %arg0, %c0_i32, %c0_i32_0 : i32, i32, i32
  }
  func.func @transform_1(%arg0: i32) -> (i32, i32, i32) {
    %c0_i32 = arith.constant 0 : i32
    %c0_i32_0 = arith.constant 0 : i32
    %c0_i32_1 = arith.constant 0 : i32
    %c0_i32_2 = arith.constant 0 : i32
    return %c0_i32, %c0_i32_0, %c0_i32_1 : i32, i32, i32
  }
  func.func @transform_2(%arg0: i32) -> (i32, i32) {
    %c0_i32 = arith.constant 0 : i32
    %c0_i32_0 = arith.constant 0 : i32
    %c0_i32_1 = arith.constant 0 : i32
    return %c0_i32, %c0_i32_0 : i32, i32
  }
  func.func @transform_3(%arg0: i32) -> (i32, i32, i32) {
    %c0_i32 = arith.constant 0 : i32
    %c0_i32_0 = arith.constant 0 : i32
    %c0_i32_1 = arith.constant 0 : i32
    %c0_i32_2 = arith.constant 0 : i32
    return %c0_i32, %c0_i32_0, %c0_i32_1 : i32, i32, i32
  }
  func.func @transform_4(%arg0: i32) -> (i32, i32) {
    %c0_i32 = arith.constant 0 : i32
    %c0_i32_0 = arith.constant 0 : i32
    %c0_i32_1 = arith.constant 0 : i32
    return %c0_i32, %c0_i32_0 : i32, i32
  }
  func.func @transform_5(%arg0: i32) -> (i32, i32) {
    %c0_i32 = arith.constant 0 : i32
    %c0_i32_0 = arith.constant 0 : i32
    %c0_i32_1 = arith.constant 0 : i32
    return %c0_i32, %c0_i32_0 : i32, i32
  }
  func.func @transform_6(%arg0: i32) -> (i32, i32) {
    %c0_i32 = arith.constant 0 : i32
    %c0_i32_0 = arith.constant 0 : i32
    %c0_i32_1 = arith.constant 0 : i32
    return %c0_i32, %c0_i32_0 : i32, i32
  }
  func.func @transform_7(%arg0: i32) -> (i32, i32, i32) {
    %c0_i32 = arith.constant 0 : i32
    %c0_i32_0 = arith.constant 0 : i32
    %c0_i32_1 = arith.constant 0 : i32
    return %arg0, %c0_i32, %c0_i32_0 : i32, i32, i32
  }
}

</mosaic_0001>

<llo_original>
// kernel: ncnn_forward_batched.1
$region0: #{ncnn_forward_batched.1}
  #allocation0 [shape = 'u32[]', space=smem, size = 0x4, offset = 0x4, fixed_abs, tag = 'smem constant byte address 0x4 - core index']
  #allocation1 [shape = 'u32[144,128]{1,0:T(1,128)}', space=vmem, size = 0x12000, scoped, tag = 'internal scratch']
  #allocation2 [shape = 'f32[32,64]{1,0:T(8,128)}', space=vmem, size = 0x4000, scoped, tag = 'scratch operand']
  #allocation3 [shape = 'f32[16,64]{1,0:T(8,128)}', space=vmem, size = 0x2000, scoped, tag = 'scratch operand']
  #allocation4 [shape = 'f32[16,32]{1,0:T(8,128)}', space=vmem, size = 0x2000, scoped, tag = 'scratch operand']
  %s0 = inlined_call_operand.vmem [shape: bf16[2,32,8], index: 0, kind: input, shape index: {}]
  %s1 = inlined_call_operand.vmem [shape: bf16[3,8,64], index: 1, kind: input, shape index: {}]
  %s2 = inlined_call_operand.vmem [shape: f32[1,64], index: 2, kind: input, shape index: {}]
  %s3 = inlined_call_operand.vmem [shape: bf16[3,64,32], index: 3, kind: input, shape index: {}]
  %s4 = inlined_call_operand.vmem [shape: f32[1,32], index: 4, kind: input, shape index: {}]
  %s5 = inlined_call_operand.vmem [shape: bf16[128,32], index: 5, kind: input, shape index: {}]
  %s6 = inlined_call_operand.vmem [shape: f32[1,32], index: 6, kind: input, shape index: {}]
  %s7 = inlined_call_operand.vmem [shape: f32[2,3,32], index: 7, kind: output, shape index: {}]
  %s8 = sld [smem:[#allocation0]]
  $region61: #{ncnn_forward_batched.1} parent=0
    _
  %s10 = ssub.s32 1, %s8
  %s11 = scalar_select 0, %s10, %s8
  loop: start=0, step=1, limit=4
  $region2: #{ncnn_forward_batched.1} parent=0 // loop_pre_header
    _
  $region3: #{ncnn_forward_batched.1} parent=0 // loop_header
    %s13 = sphi 0, %s17
    %p14 = scmp.ge.s32.totalorder %s13, 4
    %s23 = sphi 0, %s25
    %s26 = sphi 0, %s23
    %s27 = sphi 0, %s26
    %s43 = sphi 0, %s27
    %s47 = sphi 0, %s47
    %s49 = sphi 0, %s47
    %s50 = sphi 0, %s49
    %s64 = sphi 0, %s50
    %s68 = sphi 0, %s68
    %s70 = sphi 0, %s68
    %s71 = sphi 0, %s70
    %s85 = sphi 0, %s71
    %s89 = sphi 0, %s89
    %s91 = sphi 0, %s89
    %s92 = sphi 0, %s91
    %s106 = sphi 0, %s92
    %s110 = sphi 0, %s110
    %s112 = sphi 0, %s110
    %s113 = sphi 0, %s112
    %s127 = sphi 0, %s113
    %s131 = sphi 0, %s131
    %s133 = sphi 0, %s131
    %s134 = sphi 0, %s133
    %s148 = sphi 0, %s134
    %s152 = sphi 0, %s152
    %s154 = sphi 0, %s152
    %s155 = sphi 0, %s154
    %s169 = sphi 0, %s155
    %s175 = sphi 0, %s177
    %s178 = sphi 0, %s175
    %s179 = sphi 0, %s178
    %s195 = sphi 0, %s179
  $region4: #{ncnn_forward_batched.1} parent=0 // loop_header_branch
    %16 = sbr.rel (%p14) target = $region8
  $region5: #{ncnn_forward_batched.1} parent=0 // loop_body
    %s18 = ssub.s32 %s13, 1
    %s19 = ssub.s32 %s13, 2
    %s20 = sadd.s32 %s13, 1
    %s21 = ssub.s32 %s13, %s20
    %p22 = scmp.eq.s32.totalorder %s21, 0
    %s24 = sadd.s32 %s23, 1
    %s25 = scalar_select %p22, %s23, %s24
    %p28 = pneg %p22
    %p29 = scmp.eq.s32.totalorder %s13, 1
    %p30 = por %p28, %p29
    %p31 = scmp.ne.s32.totalorder %s23, %s26
    %p32 = scmp.eq.s32.totalorder %s13, 0
    %p33 = por %p31, %p32
    %p34 = scmp.ne.s32.totalorder %s23, %s26
    %p35 = scmp.eq.s32.totalorder %s18, 1
    %p36 = por %p34, %p35
    %p37 = scmp.ne.s32.totalorder %s26, %s27
    %p38 = scmp.eq.s32.totalorder %s18, 0
    %p39 = por %p37, %p38
    %p40 = scmp.ne.s32.totalorder %s26, %s27
    %p41 = scmp.eq.s32.totalorder %s19, 1
    %p42 = por %p40, %p41
    %p44 = scmp.ne.s32.totalorder %s27, %s43
    %p45 = scmp.eq.s32.totalorder %s19, 0
    %p46 = por %p44, %p45
    %s48 = sadd.s32 %s47, 1
    %p51 = scmp.eq.s32.totalorder %s13, 1
    %p52 = scmp.ne.s32.totalorder %s47, %s49
    %p53 = scmp.eq.s32.totalorder %s13, 0
    %p54 = por %p52, %p53
    %p55 = scmp.ne.s32.totalorder %s47, %s49
    %p56 = scmp.eq.s32.totalorder %s18, 1
    %p57 = por %p55, %p56
    %p58 = scmp.ne.s32.totalorder %s49, %s50
    %p59 = scmp.eq.s32.totalorder %s18, 0
    %p60 = por %p58, %p59
    %p61 = scmp.ne.s32.totalorder %s49, %s50
    %p62 = scmp.eq.s32.totalorder %s19, 1
    %p63 = por %p61, %p62
    %p65 = scmp.ne.s32.totalorder %s50, %s64
    %p66 = scmp.eq.s32.totalorder %s19, 0
    %p67 = por %p65, %p66
    %s69 = sadd.s32 %s68, 1
    %p72 = scmp.eq.s32.totalorder %s13, 1
    %p73 = scmp.ne.s32.totalorder %s68, %s70
    %p74 = scmp.eq.s32.totalorder %s13, 0
    %p75 = por %p73, %p74
    %p76 = scmp.ne.s32.totalorder %s68, %s70
    %p77 = scmp.eq.s32.totalorder %s18, 1
    %p78 = por %p76, %p77
    %p79 = scmp.ne.s32.totalorder %s70, %s71
    %p80 = scmp.eq.s32.totalorder %s18, 0
    %p81 = por %p79, %p80
    %p82 = scmp.ne.s32.totalorder %s70, %s71
    %p83 = scmp.eq.s32.totalorder %s19, 1
    %p84 = por %p82, %p83
    %p86 = scmp.ne.s32.totalorder %s71, %s85
    %p87 = scmp.eq.s32.totalorder %s19, 0
    %p88 = por %p86, %p87
    %s90 = sadd.s32 %s89, 1
    %p93 = scmp.eq.s32.totalorder %s13, 1
    %p94 = scmp.ne.s32.totalorder %s89, %s91
    %p95 = scmp.eq.s32.totalorder %s13, 0
    %p96 = por %p94, %p95
    %p97 = scmp.ne.s32.totalorder %s89, %s91
    %p98 = scmp.eq.s32.totalorder %s18, 1
    %p99 = por %p97, %p98
    %p100 = scmp.ne.s32.totalorder %s91, %s92
    %p101 = scmp.eq.s32.totalorder %s18, 0
    %p102 = por %p100, %p101
    %p103 = scmp.ne.s32.totalorder %s91, %s92
    %p104 = scmp.eq.s32.totalorder %s19, 1
    %p105 = por %p103, %p104
    %p107 = scmp.ne.s32.totalorder %s92, %s106
    %p108 = scmp.eq.s32.totalorder %s19, 0
    %p109 = por %p107, %p108
    %s111 = sadd.s32 %s110, 1
    %p114 = scmp.eq.s32.totalorder %s13, 1
    %p115 = scmp.ne.s32.totalorder %s110, %s112
    %p116 = scmp.eq.s32.totalorder %s13, 0
    %p117 = por %p115, %p116
    %p118 = scmp.ne.s32.totalorder %s110, %s112
    %p119 = scmp.eq.s32.totalorder %s18, 1
    %p120 = por %p118, %p119
    %p121 = scmp.ne.s32.totalorder %s112, %s113
    %p122 = scmp.eq.s32.totalorder %s18, 0
    %p123 = por %p121, %p122
    %p124 = scmp.ne.s32.totalorder %s112, %s113
    %p125 = scmp.eq.s32.totalorder %s19, 1
    %p126 = por %p124, %p125
    %p128 = scmp.ne.s32.totalorder %s113, %s127
    %p129 = scmp.eq.s32.totalorder %s19, 0
    %p130 = por %p128, %p129
    %s132 = sadd.s32 %s131, 1
    %p135 = scmp.eq.s32.totalorder %s13, 1
    %p136 = scmp.ne.s32.totalorder %s131, %s133
    %p137 = scmp.eq.s32.totalorder %s13, 0
    %p138 = por %p136, %p137
    %p139 = scmp.ne.s32.totalorder %s131, %s133
    %p140 = scmp.eq.s32.totalorder %s18, 1
    %p141 = por %p139, %p140
    %p142 = scmp.ne.s32.totalorder %s133, %s134
    %p143 = scmp.eq.s32.totalorder %s18, 0
    %p144 = por %p142, %p143
    %p145 = scmp.ne.s32.totalorder %s133, %s134
    %p146 = scmp.eq.s32.totalorder %s19, 1
    %p147 = por %p145, %p146
    %p149 = scmp.ne.s32.totalorder %s134, %s148
    %p150 = scmp.eq.s32.totalorder %s19, 0
    %p151 = por %p149, %p150
    %s153 = sadd.s32 %s152, 1
    %p156 = scmp.eq.s32.totalorder %s13, 1
    %p157 = scmp.ne.s32.totalorder %s152, %s154
    %p158 = scmp.eq.s32.totalorder %s13, 0
    %p159 = por %p157, %p158
    %p160 = scmp.ne.s32.totalorder %s152, %s154
    %p161 = scmp.eq.s32.totalorder %s18, 1
    %p162 = por %p160, %p161
    %p163 = scmp.ne.s32.totalorder %s154, %s155
    %p164 = scmp.eq.s32.totalorder %s18, 0
    %p165 = por %p163, %p164
    %p166 = scmp.ne.s32.totalorder %s154, %s155
    %p167 = scmp.eq.s32.totalorder %s19, 1
    %p168 = por %p166, %p167
    %p170 = scmp.ne.s32.totalorder %s155, %s169
    %p171 = scmp.eq.s32.totalorder %s19, 0
    %p172 = por %p170, %p171
    %s173 = ssub.s32 %s13, %s20
    %p174 = scmp.eq.s32.totalorder %s173, 0
    %s176 = sadd.s32 %s175, 1
    %s177 = scalar_select %p174, %s175, %s176
    %p180 = pneg %p174
    %p181 = scmp.eq.s32.totalorder %s13, 1
    %p182 = por %p180, %p181
    %p183 = scmp.ne.s32.totalorder %s175, %s178
    %p184 = scmp.eq.s32.totalorder %s13, 0
    %p185 = por %p183, %p184
    %p186 = scmp.ne.s32.totalorder %s175, %s178
    %p187 = scmp.eq.s32.totalorder %s18, 1
    %p188 = por %p186, %p187
    %p189 = scmp.ne.s32.totalorder %s178, %s179
    %p190 = scmp.eq.s32.totalorder %s18, 0
    %p191 = por %p189, %p190
    %p192 = scmp.ne.s32.totalorder %s178, %s179
    %p193 = scmp.eq.s32.totalorder %s19, 1
    %p194 = por %p192, %p193
    %p196 = scmp.ne.s32.totalorder %s179, %s195
    %p197 = scmp.eq.s32.totalorder %s19, 0
    %p198 = por %p196, %p197
    %p199 = scmp.le.s32.totalorder 1, %s13
    %p200 = scmp.lt.s32.totalorder %s13, 3
    %p201 = pnand %p199, %p200
    %p202 = pneg %p201
    // Predicated region
    $region9: #{ncnn_forward_batched.1} parent=5 // pred_check
      _
    $region10: #{ncnn_forward_batched.1} parent=5 // pred_check_branch
      %204 = sbr.rel (%p201) target = $region12
    $region11: #{ncnn_forward_batched.1} parent=5 // pred_region
      %s205 = ssub.s32 %s13, 1
      // Predicated region
      $region13: #{ncnn_forward_batched.1} parent=11 // pred_check
        %p206 = pneg %p60
      $region14: #{ncnn_forward_batched.1} parent=11 // pred_check_branch
        %208 = sbr.rel (%p206) target = $region16
      $region15: #{ncnn_forward_batched.1} parent=11 // pred_region
        _
      $region16: #{ncnn_forward_batched.1} parent=11 // pred_fallthru
        _
      // Predicated region
      $region17: #{ncnn_forward_batched.1} parent=11 // pred_check
        %p209 = pneg %p81
      $region18: #{ncnn_forward_batched.1} parent=11 // pred_check_branch
        %211 = sbr.rel (%p209) target = $region20
      $region19: #{ncnn_forward_batched.1} parent=11 // pred_region
        _
      $region20: #{ncnn_forward_batched.1} parent=11 // pred_fallthru
        _
      // Predicated region
      $region21: #{ncnn_forward_batched.1} parent=11 // pred_check
        %p212 = pneg %p102
      $region22: #{ncnn_forward_batched.1} parent=11 // pred_check_branch
        %214 = sbr.rel (%p212) target = $region24
      $region23: #{ncnn_forward_batched.1} parent=11 // pred_region
        _
      $region24: #{ncnn_forward_batched.1} parent=11 // pred_fallthru
        _
      // Predicated region
      $region25: #{ncnn_forward_batched.1} parent=11 // pred_check
        %p215 = pneg %p123
      $region26: #{ncnn_forward_batched.1} parent=11 // pred_check_branch
        %217 = sbr.rel (%p215) target = $region28
      $region27: #{ncnn_forward_batched.1} parent=11 // pred_region
        _
      $region28: #{ncnn_forward_batched.1} parent=11 // pred_fallthru
        _
      // Predicated region
      $region29: #{ncnn_forward_batched.1} parent=11 // pred_check
        %p218 = pneg %p144
      $region30: #{ncnn_forward_batched.1} parent=11 // pred_check_branch
        %220 = sbr.rel (%p218) target = $region32
      $region31: #{ncnn_forward_batched.1} parent=11 // pred_region
        _
      $region32: #{ncnn_forward_batched.1} parent=11 // pred_fallthru
        _
      // Predicated region
      $region33: #{ncnn_forward_batched.1} parent=11 // pred_check
        %p221 = pneg %p165
      $region34: #{ncnn_forward_batched.1} parent=11 // pred_check_branch
        %223 = sbr.rel (%p221) target = $region36
      $region35: #{ncnn_forward_batched.1} parent=11 // pred_region
        _
      $region36: #{ncnn_forward_batched.1} parent=11 // pred_fallthru
        _
    $region12: #{ncnn_forward_batched.1} parent=5 // pred_fallthru
      _
    %p224 = scmp.lt.s32.totalorder %s13, 2
    // Predicated region
    $region37: #{ncnn_forward_batched.1} parent=5 // pred_check
      %p225 = pneg %p224
    $region38: #{ncnn_forward_batched.1} parent=5 // pred_check_branch
      %227 = sbr.rel (%p225) target = $region40
    $region39: #{ncnn_forward_batched.1} parent=5 // pred_region
      // Predicated region
      $region41: #{ncnn_forward_batched.1} parent=39 // pred_check
        %p228 = pneg %p33
      $region42: #{ncnn_forward_batched.1} parent=39 // pred_check_branch
        %230 = sbr.rel (%p228) target = $region44
      $region43: #{ncnn_forward_batched.1} parent=39 // pred_region
        %p231 = scmp.lt.s32.totalorder %s13, 1
        %s232 = scalar_select %p231, %s13, 1
        %s233 = smul.addr %s232, 4
        %s234 = smul.addr %s233, 4
        %s235 = scalar_lea.vmem %s0, %s234
      $region44: #{ncnn_forward_batched.1} parent=39 // pred_fallthru
        _
    $region40: #{ncnn_forward_batched.1} parent=5 // pred_fallthru
      _
    %p236 = scmp.le.s32.totalorder 1, %s13
    %p237 = scmp.lt.s32.totalorder %s13, 3
    %p238 = pnand %p236, %p237
    %p239 = pneg %p238
    // Predicated region
    $region45: #{ncnn_forward_batched.1} parent=5 // pred_check
      _
    $region46: #{ncnn_forward_batched.1} parent=5 // pred_check_branch
      %241 = sbr.rel (%p238) target = $region48
    $region47: #{ncnn_forward_batched.1} parent=5 // pred_region
      %s242 = ssub.s32 %s13, 1
      %p243 = scmp.lt.s32.totalorder %s18, 1
      %s244 = scalar_select %p243, %s18, 1
      %s245 = smul.addr %s244, 4
      %s246 = smul.addr %s245, 4
      %s247 = scalar_lea.vmem %s0, %s246
      %p248 = pneg %p39
      %p249 = pneg %p36
      %p250 = pneg %p60
      %p251 = pneg %p57
      %p252 = pneg %p81
      %p253 = pneg %p78
      %p254 = pneg %p102
      %p255 = pneg %p99
      %p256 = pneg %p123
      %p257 = pneg %p120
      %p258 = pneg %p144
      %p259 = pneg %p141
      %p260 = pneg %p165
      %p261 = pneg %p162
      %p262 = pneg %p191
      %p263 = pneg %p188
      %p264 = scmp.lt.s32.totalorder %s18, 1
      %s265 = scalar_select %p264, %s18, 1
      %s266 = smul.addr %s265, 4
      %s267 = scalar_lea.vmem %s7, %s266
      %p268 = scmp.lt.s32.totalorder %s18, 1
      %s269 = scalar_select %p268, %s18, 1
      %s270 = smul.addr %s269, 4
      %s271 = smul.addr %s270, 4
      %s272 = scalar_lea.vmem %s0, %s271
      %p273 = scmp.lt.s32.totalorder %s18, 1
      %s274 = scalar_select %p273, %s18, 1
      %s275 = smul.addr %s274, 4
      %s276 = scalar_lea.vmem %s7, %s275
      %v278 = vld [vmem:[%s272] sm:$0xf]
      %v279 = vld [vmem:[%s272 + $0x4] sm:$0xf]
      %v280 = vld [vmem:[%s272 + $0x8] sm:$0xf]
      %v281 = vld [vmem:[%s272 + $0xc] sm:$0xf]
      %v284 = vunpack.c.l.b16 %v278
      %v285 = vunpack.c.l.b16 %v279
      %v286 = vpack.c.b16 %v285, %v284
      %v288 = vshrl.u32 %v286, 16
      %v290 = vrot.slane %v288, 7
      %v291 = vshll.u32 %v286, 16
      %v293 = vor.u32 %v290, %v291
      %v297 = vunpack.c.l.b16 %v280
      %v298 = vunpack.c.l.b16 %v281
      %v299 = vpack.c.b16 %v298, %v297
      %v301 = vshrl.u32 %v299, 16
      %v303 = vrot.slane %v301, 7
      %v304 = vshll.u32 %v299, 16
      %v306 = vor.u32 %v303, %v304
      %vm308 = vcmask 1040384
      %vm309 = vsmask.f32 256
      %vm310 = vmand %vm308, %vm309
      %v311 = vsel %vm310, 0, %v293
      %v312 = vsel %vm310, 0, %v306
      %v313 = vrot.slane %v291, 1
      %v314 = vor.u32 %v288, %v313
      %v316 = vrot.slane %v304, 1
      %v317 = vor.u32 %v301, %v316
      %vm319 = vcmask 1047552
      %vm320 = vsmask.f32 7424
      %vm321 = vmand %vm319, %vm320
      %v322 = vsel %vm321, %v314, 0
      %v323 = vsel %vm321, %v317, 0
      %v324 = vld [vmem:[%s1] sm:$0xf]
      %s325 = scalar_lea.vmem %s1, 4
      %v326 = vld [vmem:[%s325] sm:$0xf]
      %vm327 = vcmask 64512
      %v328 = vsel %vm327, %v286, 0
      %v330 = vsel %vm327, %v299, 0
      %vm332 = vcmask 1043456
      %v334 = vsel %vm332, %v326, 0
      %336 = vmatprep.subr.bf16.mxu0 0
      %337 = vmatpush1.bf16.msra.mxu0 0
      %338 = vmatprep.subr.bf16.mxu0 0
      %339 = vmatpush1.bf16.msra.mxu0 0
      %340 = vmatprep.subr.bf16.mxu0 0
      %341 = vmatpush1.bf16.msra.mxu0 0
      %342 = vmatprep.subr.bf16.mxu0 0
      %343 = vmatpush1.bf16.msra.mxu0 0
      %344 = vmatprep.subr.bf16.mxu0 0
      %345 = vmatpush1.bf16.msra.mxu0 0
      %346 = vmatprep.subr.bf16.mxu0 0
      %347 = vmatpush1.bf16.msra.mxu0 0
      %348 = vmatprep.subr.bf16.mxu0 0
      %349 = vmatpush1.bf16.msra.mxu0 0
      %350 = vmatprep.subr.bf16.mxu0 0
      %351 = vmatpush1.bf16.msra.mxu0 %v334
      %352 = vmatprep.subr.bf16.mxu0 0
      %353 = vmatpush2.bf16.msra.mxu0 0
      %354 = vmatprep.subr.bf16.mxu0 0
      %355 = vmatpush2.bf16.msra.mxu0 0
      %356 = vmatprep.subr.bf16.mxu0 0
      %357 = vmatpush2.bf16.msra.mxu0 0
      %358 = vmatprep.subr.bf16.mxu0 0
      %359 = vmatpush2.bf16.msra.mxu0 0
      %360 = vmatprep.subr.bf16.mxu0 0
      %361 = vmatpush2.bf16.msra.mxu0 0
      %362 = vmatprep.subr.bf16.mxu0 0
      %363 = vmatpush2.bf16.msra.mxu0 0
      %364 = vmatprep.subr.bf16.mxu0 0
      %365 = vmatpush2.bf16.msra.mxu0 0
      %366 = vmatprep.subr.bf16.mxu0 0
      %367 = vmatpush2.bf16.msra.mxu0 0
      %368 = vmatprep.mubr.bf16.mxu0 0
      %369 = vmatmul.mubr.bf16.gmra.mxu0 %v328
      %v370 = vpop.f32.mrf.mxu0
      %v371 = vadd.f32 0.0, %v370
      %v372 = vpop.f32.mrf.mxu0
      %v373 = vpop.f32.mrf.mxu0
      %v374 = vadd.f32 0.0, %v373
      %v375 = vpop.f32.mrf.mxu0
      %376 = vmatprep.mubr.bf16.mxu0 0
      %377 = vmatmul.mubr.bf16.gmra.mxu0 %v330
      %v378 = vpop.f32.mrf.mxu0
      %v379 = vadd.f32 0.0, %v378
      %v380 = vpop.f32.mrf.mxu0
      %v381 = vpop.f32.mrf.mxu0
      %v382 = vadd.f32 0.0, %v381
      %v383 = vpop.f32.mrf.mxu0
      %384 = vdwg.mxu0
      %v386 = vsel %vm327, %v311, 0
      %v389 = vsel %vm327, %v312, 0
      %v392 = vsel %vm332, %v324, 0
      %394 = vmatprep.subr.bf16.mxu0 0
      %395 = vmatpush1.bf16.msra.mxu0 0
      %396 = vmatprep.subr.bf16.mxu0 0
      %397 = vmatpush1.bf16.msra.mxu0 0
      %398 = vmatprep.subr.bf16.mxu0 0
      %399 = vmatpush1.bf16.msra.mxu0 0
      %400 = vmatprep.subr.bf16.mxu0 0
      %401 = vmatpush1.bf16.msra.mxu0 0
      %402 = vmatprep.subr.bf16.mxu0 0
      %403 = vmatpush1.bf16.msra.mxu0 0
      %404 = vmatprep.subr.bf16.mxu0 0
      %405 = vmatpush1.bf16.msra.mxu0 0
      %406 = vmatprep.subr.bf16.mxu0 0
      %407 = vmatpush1.bf16.msra.mxu0 0
      %408 = vmatprep.subr.bf16.mxu0 0
      %409 = vmatpush1.bf16.msra.mxu0 %v392
      %410 = vmatprep.subr.bf16.mxu0 0
      %411 = vmatpush2.bf16.msra.mxu0 0
      %412 = vmatprep.subr.bf16.mxu0 0
      %413 = vmatpush2.bf16.msra.mxu0 0
      %414 = vmatprep.subr.bf16.mxu0 0
      %415 = vmatpush2.bf16.msra.mxu0 0
      %416 = vmatprep.subr.bf16.mxu0 0
      %417 = vmatpush2.bf16.msra.mxu0 0
      %418 = vmatprep.subr.bf16.mxu0 0
      %419 = vmatpush2.bf16.msra.mxu0 0
      %420 = vmatprep.subr.bf16.mxu0 0
      %421 = vmatpush2.bf16.msra.mxu0 0
      %422 = vmatprep.subr.bf16.mxu0 0
      %423 = vmatpush2.bf16.msra.mxu0 0
      %424 = vmatprep.subr.bf16.mxu0 0
      %425 = vmatpush2.bf16.msra.mxu0 0
      %426 = vmatprep.mubr.bf16.mxu0 0
      %427 = vmatmul.mubr.bf16.gmra.mxu0 %v386
      %v428 = vpop.f32.mrf.mxu0
      %v429 = vadd.f32 %v371, %v428
      %v430 = vpop.f32.mrf.mxu0
      %v431 = vpop.f32.mrf.mxu0
      %v432 = vadd.f32 %v374, %v431
      %v433 = vpop.f32.mrf.mxu0
      %434 = vmatprep.mubr.bf16.mxu0 0
      %435 = vmatmul.mubr.bf16.gmra.mxu0 %v389
      %v436 = vpop.f32.mrf.mxu0
      %v437 = vadd.f32 %v379, %v436
      %v438 = vpop.f32.mrf.mxu0
      %v439 = vpop.f32.mrf.mxu0
      %v440 = vadd.f32 %v382, %v439
      %v441 = vpop.f32.mrf.mxu0
      %442 = vdwg.mxu0
      %s443 = scalar_lea.vmem %s1, 8
      %v444 = vld [vmem:[%s443] sm:$0xf]
      %v446 = vsel %vm327, %v322, 0
      %v449 = vsel %vm327, %v323, 0
      %v452 = vsel %vm332, %v444, 0
      %454 = vmatprep.subr.bf16.mxu0 0
      %455 = vmatpush1.bf16.msra.mxu0 0
      %456 = vmatprep.subr.bf16.mxu0 0
      %457 = vmatpush1.bf16.msra.mxu0 0
      %458 = vmatprep.subr.bf16.mxu0 0
      %459 = vmatpush1.bf16.msra.mxu0 0
      %460 = vmatprep.subr.bf16.mxu0 0
      %461 = vmatpush1.bf16.msra.mxu0 0
      %462 = vmatprep.subr.bf16.mxu0 0
      %463 = vmatpush1.bf16.msra.mxu0 0
      %464 = vmatprep.subr.bf16.mxu0 0
      %465 = vmatpush1.bf16.msra.mxu0 0
      %466 = vmatprep.subr.bf16.mxu0 0
      %467 = vmatpush1.bf16.msra.mxu0 0
      %468 = vmatprep.subr.bf16.mxu0 0
      %469 = vmatpush1.bf16.msra.mxu0 %v452
      %470 = vmatprep.subr.bf16.mxu0 0
      %471 = vmatpush2.bf16.msra.mxu0 0
      %472 = vmatprep.subr.bf16.mxu0 0
      %473 = vmatpush2.bf16.msra.mxu0 0
      %474 = vmatprep.subr.bf16.mxu0 0
      %475 = vmatpush2.bf16.msra.mxu0 0
      %476 = vmatprep.subr.bf16.mxu0 0
      %477 = vmatpush2.bf16.msra.mxu0 0
      %478 = vmatprep.subr.bf16.mxu0 0
      %479 = vmatpush2.bf16.msra.mxu0 0
      %480 = vmatprep.subr.bf16.mxu0 0
      %481 = vmatpush2.bf16.msra.mxu0 0
      %482 = vmatprep.subr.bf16.mxu0 0
      %483 = vmatpush2.bf16.msra.mxu0 0
      %484 = vmatprep.subr.bf16.mxu0 0
      %485 = vmatpush2.bf16.msra.mxu0 0
      %486 = vmatprep.mubr.bf16.mxu0 0
      %487 = vmatmul.mubr.bf16.gmra.mxu0 %v446
      %v488 = vpop.f32.mrf.mxu0
      %v489 = vadd.f32 0.0, %v488
      %v490 = vpop.f32.mrf.mxu0
      %v491 = vpop.f32.mrf.mxu0
      %v492 = vadd.f32 0.0, %v491
      %v493 = vpop.f32.mrf.mxu0
      %494 = vmatprep.mubr.bf16.mxu0 0
      %495 = vmatmul.mubr.bf16.gmra.mxu0 %v449
      %v496 = vpop.f32.mrf.mxu0
      %v497 = vadd.f32 0.0, %v496
      %v498 = vpop.f32.mrf.mxu0
      %v499 = vpop.f32.mrf.mxu0
      %v500 = vadd.f32 0.0, %v499
      %v501 = vpop.f32.mrf.mxu0
      %502 = vdwg.mxu0
      %v503 = vadd.f32 %v429, %v489
      %v504 = vadd.f32 %v432, %v492
      %v505 = vadd.f32 %v437, %v497
      %v506 = vadd.f32 %v440, %v500
      %v507 = vld [vmem:[%s2] sm:$0x1]
      %v509 = vlaneseq
      %v510 = vshrl.u32 %v509, 7
      %v511 = vsub.s32 0, %v510
      %v512 = vrot.slane %v507, %v511
      %v514 = vadd.f32 %v503, %v512
      %v515 = vadd.f32 %v504, %v512
      %v516 = vadd.f32 %v505, %v512
      %v517 = vadd.f32 %v506, %v512
      %v518 = vmax.f32 %v514, 0.0
      %v519 = vmax.f32 %v515, 0.0
      %v520 = vmax.f32 %v516, 0.0
      %v521 = vmax.f32 %v517, 0.0
      %vm522 = vcmask 523264
      %523 = vst.msk [vmem:[#allocation2] sm:$0xff] %vm522, %v518
      %524 = vst.msk [vmem:[#allocation2 + $0x8] sm:$0xff] %vm522, %v519
      %525 = vst.msk [vmem:[#allocation2 + $0x10] sm:$0xff] %vm522, %v520
      %526 = vst.msk [vmem:[#allocation2 + $0x18] sm:$0xff] %vm522, %v521
      %v527 = vld [vmem:[#allocation2] sm:$0x3]
      %vm528 = vcmask 517120
      %v529 = vsel %vm528, %v527, -inf
      %v530 = vrot.slane %v529, 4
      %v531 = vmax.f32 %v529, %v530
      %v532 = vrot.slane %v531, 2
      %v533 = vmax.f32 %v531, %v532
      %v534 = vrot.slane %v533, 1
      %v535 = vmax.f32 %v533, %v534
      %v536 = vld [vmem:[#allocation2 + $0x2] sm:$0x3]
      %v537 = vsel %vm528, %v536, -inf
      %v538 = vrot.slane %v537, 4
      %v539 = vmax.f32 %v537, %v538
      %v540 = vrot.slane %v539, 2
      %v541 = vmax.f32 %v539, %v540
      %v542 = vrot.slane %v541, 1
      %v543 = vmax.f32 %v541, %v542
      %v544 = vld [vmem:[#allocation2 + $0x4] sm:$0x3]
      %v545 = vsel %vm528, %v544, -inf
      %v546 = vrot.slane %v545, 4
      %v547 = vmax.f32 %v545, %v546
      %v548 = vrot.slane %v547, 2
      %v549 = vmax.f32 %v547, %v548
      %v550 = vrot.slane %v549, 1
      %v551 = vmax.f32 %v549, %v550
      %v552 = vld [vmem:[#allocation2 + $0x6] sm:$0x3]
      %v553 = vsel %vm528, %v552, -inf
      %v554 = vrot.slane %v553, 4
      %v555 = vmax.f32 %v553, %v554
      %v556 = vrot.slane %v555, 2
      %v557 = vmax.f32 %v555, %v556
      %v558 = vrot.slane %v557, 1
      %v559 = vmax.f32 %v557, %v558
      %v560 = vld [vmem:[#allocation2 + $0x8] sm:$0x3]
      %v561 = vsel %vm528, %v560, -inf
      %v562 = vrot.slane %v561, 4
      %v563 = vmax.f32 %v561, %v562
      %v564 = vrot.slane %v563, 2
      %v565 = vmax.f32 %v563, %v564
      %v566 = vrot.slane %v565, 1
      %v567 = vmax.f32 %v565, %v566
      %v568 = vld [vmem:[#allocation2 + $0xa] sm:$0x3]
      %v569 = vsel %vm528, %v568, -inf
      %v570 = vrot.slane %v569, 4
      %v571 = vmax.f32 %v569, %v570
      %v572 = vrot.slane %v571, 2
      %v573 = vmax.f32 %v571, %v572
      %v574 = vrot.slane %v573, 1
      %v575 = vmax.f32 %v573, %v574
      %v576 = vld [vmem:[#allocation2 + $0xc] sm:$0x3]
      %v577 = vsel %vm528, %v576, -inf
      %v578 = vrot.slane %v577, 4
      %v579 = vmax.f32 %v577, %v578
      %v580 = vrot.slane %v579, 2
      %v581 = vmax.f32 %v579, %v580
      %v582 = vrot.slane %v581, 1
      %v583 = vmax.f32 %v581, %v582
      %v584 = vld [vmem:[#allocation2 + $0xe] sm:$0x3]
      %v585 = vsel %vm528, %v584, -inf
      %v586 = vrot.slane %v585, 4
      %v587 = vmax.f32 %v585, %v586
      %v588 = vrot.slane %v587, 2
      %v589 = vmax.f32 %v587, %v588
      %v590 = vrot.slane %v589, 1
      %v591 = vmax.f32 %v589, %v590
      %v592 = vld [vmem:[#allocation2 + $0x10] sm:$0x3]
      %v593 = vsel %vm528, %v592, -inf
      %v594 = vrot.slane %v593, 4
      %v595 = vmax.f32 %v593, %v594
      %v596 = vrot.slane %v595, 2
      %v597 = vmax.f32 %v595, %v596
      %v598 = vrot.slane %v597, 1
      %v599 = vmax.f32 %v597, %v598
      %v600 = vld [vmem:[#allocation2 + $0x12] sm:$0x3]
      %v601 = vsel %vm528, %v600, -inf
      %v602 = vrot.slane %v601, 4
      %v603 = vmax.f32 %v601, %v602
      %v604 = vrot.slane %v603, 2
      %v605 = vmax.f32 %v603, %v604
      %v606 = vrot.slane %v605, 1
      %v607 = vmax.f32 %v605, %v606
      %v608 = vld [vmem:[#allocation2 + $0x14] sm:$0x3]
      %v609 = vsel %vm528, %v608, -inf
      %v610 = vrot.slane %v609, 4
      %v611 = vmax.f32 %v609, %v610
      %v612 = vrot.slane %v611, 2
      %v613 = vmax.f32 %v611, %v612
      %v614 = vrot.slane %v613, 1
      %v615 = vmax.f32 %v613, %v614
      %v616 = vld [vmem:[#allocation2 + $0x16] sm:$0x3]
      %v617 = vsel %vm528, %v616, -inf
      %v618 = vrot.slane %v617, 4
      %v619 = vmax.f32 %v617, %v618
      %v620 = vrot.slane %v619, 2
      %v621 = vmax.f32 %v619, %v620
      %v622 = vrot.slane %v621, 1
      %v623 = vmax.f32 %v621, %v622
      %v624 = vld [vmem:[#allocation2 + $0x18] sm:$0x3]
      %v625 = vsel %vm528, %v624, -inf
      %v626 = vrot.slane %v625, 4
      %v627 = vmax.f32 %v625, %v626
      %v628 = vrot.slane %v627, 2
      %v629 = vmax.f32 %v627, %v628
      %v630 = vrot.slane %v629, 1
      %v631 = vmax.f32 %v629, %v630
      %v632 = vld [vmem:[#allocation2 + $0x1a] sm:$0x3]
      %v633 = vsel %vm528, %v632, -inf
      %v634 = vrot.slane %v633, 4
      %v635 = vmax.f32 %v633, %v634
      %v636 = vrot.slane %v635, 2
      %v637 = vmax.f32 %v635, %v636
      %v638 = vrot.slane %v637, 1
      %v639 = vmax.f32 %v637, %v638
      %v640 = vld [vmem:[#allocation2 + $0x1c] sm:$0x3]
      %v641 = vsel %vm528, %v640, -inf
      %v642 = vrot.slane %v641, 4
      %v643 = vmax.f32 %v641, %v642
      %v644 = vrot.slane %v643, 2
      %v645 = vmax.f32 %v643, %v644
      %v646 = vrot.slane %v645, 1
      %v647 = vmax.f32 %v645, %v646
      %v648 = vld [vmem:[#allocation2 + $0x1e] sm:$0x3]
      %v649 = vsel %vm528, %v648, -inf
      %v650 = vrot.slane %v649, 4
      %v651 = vmax.f32 %v649, %v650
      %v652 = vrot.slane %v651, 2
      %v653 = vmax.f32 %v651, %v652
      %v654 = vrot.slane %v653, 1
      %v655 = vmax.f32 %v653, %v654
      %vm656 = vcmask 1040384
      %v657 = vsel %vm656, %v535, %v543
      %vm658 = vcmask 1041408
      %v659 = vsel %vm658, %v657, %v551
      %vm660 = vcmask 1042432
      %v661 = vsel %vm660, %v659, %v559
      %v662 = vsel %vm332, %v661, %v567
      %vm663 = vcmask 1044480
      %v664 = vsel %vm663, %v662, %v575
      %vm665 = vcmask 1045504
      %v666 = vsel %vm665, %v664, %v583
      %vm667 = vcmask 1046528
      %v668 = vsel %vm667, %v666, %v591
      %v669 = vsel %vm656, %v599, %v607
      %v670 = vsel %vm658, %v669, %v615
      %v671 = vsel %vm660, %v670, %v623
      %v672 = vsel %vm332, %v671, %v631
      %v673 = vsel %vm663, %v672, %v639
      %v674 = vsel %vm665, %v673, %v647
      %v675 = vsel %vm667, %v674, %v655
      %676 = vst.msk [vmem:[#allocation3] sm:$0xff] %vm522, %v668
      %677 = vst.msk [vmem:[#allocation3 + $0x8] sm:$0xff] %vm522, %v675
      %v678 = vld [vmem:[#allocation3] sm:$0xff]
      %v679 = vld [vmem:[#allocation3 + $0x8] sm:$0xff]
      %v680 = vld [vmem:[#allocation3] sm:$0x7f]
      %v681 = vld [vmem:[#allocation3 + $0x8] sm:$0x7f]
      %v683 = vrot.slane %v680, 7
      %v686 = vrot.slane %v681, 7
      %v688 = vsel %vm656, 0.0, %v683
      %v689 = vsel %vm656, 0.0, %v686
      %v690 = vld [vmem:[#allocation3 + $0x1] sm:$0x7f]
      %v691 = vld [vmem:[#allocation3 + $0x9] sm:$0x7f]
      %v692 = vsel %vm667, %v690, 0.0
      %v693 = vsel %vm667, %v691, 0.0
      %v694 = vpack.c.bf16 %v689, %v688
      %v695 = vld [vmem:[%s3] sm:$0xf]
      %v696 = vld [vmem:[%s3 + $0x4] sm:$0xf]
      %v697 = vld [vmem:[%s3 + $0x8] sm:$0xf]
      %v698 = vld [vmem:[%s3 + $0xc] sm:$0xf]
      %v699 = vld [vmem:[%s3 + $0x10] sm:$0xf]
      %v700 = vld [vmem:[%s3 + $0x14] sm:$0xf]
      %v701 = vld [vmem:[%s3 + $0x18] sm:$0xf]
      %v702 = vld [vmem:[%s3 + $0x1c] sm:$0xf]
      %v703 = vpack.c.bf16 %v679, %v678
      %s704 = scalar_lea.vmem %s3, 32
      %v705 = vld [vmem:[%s704] sm:$0xf]
      %v706 = vld [vmem:[%s704 + $0x4] sm:$0xf]
      %v707 = vld [vmem:[%s704 + $0x8] sm:$0xf]
      %v708 = vld [vmem:[%s704 + $0xc] sm:$0xf]
      %v709 = vld [vmem:[%s704 + $0x10] sm:$0xf]
      %v710 = vld [vmem:[%s704 + $0x14] sm:$0xf]
      %v711 = vld [vmem:[%s704 + $0x18] sm:$0xf]
      %v712 = vld [vmem:[%s704 + $0x1c] sm:$0xf]
      %v721 = vunpack.c.l.b16 %v705
      %v722 = vunpack.c.l.b16 %v706
      %v723 = vunpack.c.l.b16 %v707
      %v724 = vunpack.c.l.b16 %v708
      %v725 = vunpack.c.l.b16 %v709
      %v726 = vunpack.c.l.b16 %v710
      %v727 = vunpack.c.l.b16 %v711
      %v728 = vunpack.c.l.b16 %v712
      %v729 = vpack.c.b16 %v722, %v721
      %v730 = vpack.c.b16 %v724, %v723
      %v731 = vpack.c.b16 %v726, %v725
      %v732 = vpack.c.b16 %v728, %v727
      %v738 = vsel %vm522, %v703, 0
      %740 = vmatprep.subr.bf16.mxu0 0
      %741 = vmatpush1.bf16.msra.mxu0 0
      %742 = vmatprep.subr.bf16.mxu0 0
      %743 = vmatpush1.bf16.msra.mxu0 0
      %744 = vmatprep.subr.bf16.mxu0 0
      %745 = vmatpush1.bf16.msra.mxu0 0
      %746 = vmatprep.subr.bf16.mxu0 0
      %747 = vmatpush1.bf16.msra.mxu0 0
      %748 = vmatprep.subr.bf16.mxu0 0
      %749 = vmatpush1.bf16.msra.mxu0 %v732
      %750 = vmatprep.subr.bf16.mxu0 0
      %751 = vmatpush1.bf16.msra.mxu0 %v731
      %752 = vmatprep.subr.bf16.mxu0 0
      %753 = vmatpush1.bf16.msra.mxu0 %v730
      %754 = vmatprep.subr.bf16.mxu0 0
      %755 = vmatpush1.bf16.msra.mxu0 %v729
      %756 = vmatprep.subr.bf16.mxu0 0
      %757 = vmatpush2.bf16.msra.mxu0 0
      %758 = vmatprep.subr.bf16.mxu0 0
      %759 = vmatpush2.bf16.msra.mxu0 0
      %760 = vmatprep.subr.bf16.mxu0 0
      %761 = vmatpush2.bf16.msra.mxu0 0
      %762 = vmatprep.subr.bf16.mxu0 0
      %763 = vmatpush2.bf16.msra.mxu0 0
      %764 = vmatprep.subr.bf16.mxu0 0
      %765 = vmatpush2.bf16.msra.mxu0 0
      %766 = vmatprep.subr.bf16.mxu0 0
      %767 = vmatpush2.bf16.msra.mxu0 0
      %768 = vmatprep.subr.bf16.mxu0 0
      %769 = vmatpush2.bf16.msra.mxu0 0
      %770 = vmatprep.subr.bf16.mxu0 0
      %771 = vmatpush2.bf16.msra.mxu0 0
      %772 = vmatprep.mubr.bf16.mxu0 0
      %773 = vmatmul.mubr.bf16.gmra.mxu0 %v738
      %v774 = vpop.f32.mrf.mxu0
      %v775 = vadd.f32 0.0, %v774
      %v776 = vpop.f32.mrf.mxu0
      %v777 = vpop.f32.mrf.mxu0
      %v778 = vadd.f32 0.0, %v777
      %v779 = vpop.f32.mrf.mxu0
      %780 = vdwg.mxu0
      %v789 = vunpack.c.l.b16 %v695
      %v790 = vunpack.c.l.b16 %v696
      %v791 = vunpack.c.l.b16 %v697
      %v792 = vunpack.c.l.b16 %v698
      %v793 = vunpack.c.l.b16 %v699
      %v794 = vunpack.c.l.b16 %v700
      %v795 = vunpack.c.l.b16 %v701
      %v796 = vunpack.c.l.b16 %v702
      %v797 = vpack.c.b16 %v790, %v789
      %v798 = vpack.c.b16 %v792, %v791
      %v799 = vpack.c.b16 %v794, %v793
      %v800 = vpack.c.b16 %v796, %v795
      %v806 = vsel %vm522, %v694, 0
      %808 = vmatprep.subr.bf16.mxu0 0
      %809 = vmatpush1.bf16.msra.mxu0 0
      %810 = vmatprep.subr.bf16.mxu0 0
      %811 = vmatpush1.bf16.msra.mxu0 0
      %812 = vmatprep.subr.bf16.mxu0 0
      %813 = vmatpush1.bf16.msra.mxu0 0
      %814 = vmatprep.subr.bf16.mxu0 0
      %815 = vmatpush1.bf16.msra.mxu0 0
      %816 = vmatprep.subr.bf16.mxu0 0
      %817 = vmatpush1.bf16.msra.mxu0 %v800
      %818 = vmatprep.subr.bf16.mxu0 0
      %819 = vmatpush1.bf16.msra.mxu0 %v799
      %820 = vmatprep.subr.bf16.mxu0 0
      %821 = vmatpush1.bf16.msra.mxu0 %v798
      %822 = vmatprep.subr.bf16.mxu0 0
      %823 = vmatpush1.bf16.msra.mxu0 %v797
      %824 = vmatprep.subr.bf16.mxu0 0
      %825 = vmatpush2.bf16.msra.mxu0 0
      %826 = vmatprep.subr.bf16.mxu0 0
      %827 = vmatpush2.bf16.msra.mxu0 0
      %828 = vmatprep.subr.bf16.mxu0 0
      %829 = vmatpush2.bf16.msra.mxu0 0
      %830 = vmatprep.subr.bf16.mxu0 0
      %831 = vmatpush2.bf16.msra.mxu0 0
      %832 = vmatprep.subr.bf16.mxu0 0
      %833 = vmatpush2.bf16.msra.mxu0 0
      %834 = vmatprep.subr.bf16.mxu0 0
      %835 = vmatpush2.bf16.msra.mxu0 0
      %836 = vmatprep.subr.bf16.mxu0 0
      %837 = vmatpush2.bf16.msra.mxu0 0
      %838 = vmatprep.subr.bf16.mxu0 0
      %839 = vmatpush2.bf16.msra.mxu0 0
      %840 = vmatprep.mubr.bf16.mxu0 0
      %841 = vmatmul.mubr.bf16.gmra.mxu0 %v806
      %v842 = vpop.f32.mrf.mxu0
      %v843 = vadd.f32 %v775, %v842
      %v844 = vpop.f32.mrf.mxu0
      %v845 = vpop.f32.mrf.mxu0
      %v846 = vadd.f32 %v778, %v845
      %v847 = vpop.f32.mrf.mxu0
      %848 = vdwg.mxu0
      %v849 = vpack.c.bf16 %v693, %v692
      %s850 = scalar_lea.vmem %s3, 64
      %v851 = vld [vmem:[%s850] sm:$0xf]
      %v852 = vld [vmem:[%s850 + $0x4] sm:$0xf]
      %v853 = vld [vmem:[%s850 + $0x8] sm:$0xf]
      %v854 = vld [vmem:[%s850 + $0xc] sm:$0xf]
      %v855 = vld [vmem:[%s850 + $0x10] sm:$0xf]
      %v856 = vld [vmem:[%s850 + $0x14] sm:$0xf]
      %v857 = vld [vmem:[%s850 + $0x18] sm:$0xf]
      %v858 = vld [vmem:[%s850 + $0x1c] sm:$0xf]
      %v867 = vunpack.c.l.b16 %v851
      %v868 = vunpack.c.l.b16 %v852
      %v869 = vunpack.c.l.b16 %v853
      %v870 = vunpack.c.l.b16 %v854
      %v871 = vunpack.c.l.b16 %v855
      %v872 = vunpack.c.l.b16 %v856
      %v873 = vunpack.c.l.b16 %v857
      %v874 = vunpack.c.l.b16 %v858
      %v875 = vpack.c.b16 %v868, %v867
      %v876 = vpack.c.b16 %v870, %v869
      %v877 = vpack.c.b16 %v872, %v871
      %v878 = vpack.c.b16 %v874, %v873
      %v884 = vsel %vm522, %v849, 0
      %886 = vmatprep.subr.bf16.mxu0 0
      %887 = vmatpush1.bf16.msra.mxu0 0
      %888 = vmatprep.subr.bf16.mxu0 0
      %889 = vmatpush1.bf16.msra.mxu0 0
      %890 = vmatprep.subr.bf16.mxu0 0
      %891 = vmatpush1.bf16.msra.mxu0 0
      %892 = vmatprep.subr.bf16.mxu0 0
      %893 = vmatpush1.bf16.msra.mxu0 0
      %894 = vmatprep.subr.bf16.mxu0 0
      %895 = vmatpush1.bf16.msra.mxu0 %v878
      %896 = vmatprep.subr.bf16.mxu0 0
      %897 = vmatpush1.bf16.msra.mxu0 %v877
      %898 = vmatprep.subr.bf16.mxu0 0
      %899 = vmatpush1.bf16.msra.mxu0 %v876
      %900 = vmatprep.subr.bf16.mxu0 0
      %901 = vmatpush1.bf16.msra.mxu0 %v875
      %902 = vmatprep.subr.bf16.mxu0 0
      %903 = vmatpush2.bf16.msra.mxu0 0
      %904 = vmatprep.subr.bf16.mxu0 0
      %905 = vmatpush2.bf16.msra.mxu0 0
      %906 = vmatprep.subr.bf16.mxu0 0
      %907 = vmatpush2.bf16.msra.mxu0 0
      %908 = vmatprep.subr.bf16.mxu0 0
      %909 = vmatpush2.bf16.msra.mxu0 0
      %910 = vmatprep.subr.bf16.mxu0 0
      %911 = vmatpush2.bf16.msra.mxu0 0
      %912 = vmatprep.subr.bf16.mxu0 0
      %913 = vmatpush2.bf16.msra.mxu0 0
      %914 = vmatprep.subr.bf16.mxu0 0
      %915 = vmatpush2.bf16.msra.mxu0 0
      %916 = vmatprep.subr.bf16.mxu0 0
      %917 = vmatpush2.bf16.msra.mxu0 0
      %918 = vmatprep.mubr.bf16.mxu0 0
      %919 = vmatmul.mubr.bf16.gmra.mxu0 %v884
      %v920 = vpop.f32.mrf.mxu0
      %v921 = vadd.f32 0.0, %v920
      %v922 = vpop.f32.mrf.mxu0
      %v923 = vpop.f32.mrf.mxu0
      %v924 = vadd.f32 0.0, %v923
      %v925 = vpop.f32.mrf.mxu0
      %926 = vdwg.mxu0
      %v927 = vadd.f32 %v843, %v921
      %v928 = vadd.f32 %v846, %v924
      %v929 = vld [vmem:[%s4] sm:$0x1]
      %v931 = vlaneseq
      %v932 = vshrl.u32 %v931, 7
      %v933 = vsub.s32 0, %v932
      %v934 = vrot.slane %v929, %v933
      %v936 = vadd.f32 %v927, %v934
      %v937 = vadd.f32 %v928, %v934
      %v938 = vmax.f32 %v936, 0.0
      %v939 = vmax.f32 %v937, 0.0
      %vm940 = vcmask 261120
      %941 = vst.msk [vmem:[#allocation4] sm:$0xff] %vm940, %v938
      %942 = vst.msk [vmem:[#allocation4 + $0x8] sm:$0xff] %vm940, %v939
      %v943 = vld [vmem:[#allocation4] sm:$0x3]
      %vm944 = vcmask 254976
      %v945 = vsel %vm944, %v943, -inf
      %v946 = vrot.slane %v945, 4
      %v947 = vmax.f32 %v945, %v946
      %v948 = vrot.slane %v947, 2
      %v949 = vmax.f32 %v947, %v948
      %v950 = vrot.slane %v949, 1
      %v951 = vmax.f32 %v949, %v950
      %v952 = vld [vmem:[#allocation4 + $0x2] sm:$0x3]
      %v953 = vsel %vm944, %v952, -inf
      %v954 = vrot.slane %v953, 4
      %v955 = vmax.f32 %v953, %v954
      %v956 = vrot.slane %v955, 2
      %v957 = vmax.f32 %v955, %v956
      %v958 = vrot.slane %v957, 1
      %v959 = vmax.f32 %v957, %v958
      %v960 = vld [vmem:[#allocation4 + $0x4] sm:$0x3]
      %v961 = vsel %vm944, %v960, -inf
      %v962 = vrot.slane %v961, 4
      %v963 = vmax.f32 %v961, %v962
      %v964 = vrot.slane %v963, 2
      %v965 = vmax.f32 %v963, %v964
      %v966 = vrot.slane %v965, 1
      %v967 = vmax.f32 %v965, %v966
      %v968 = vld [vmem:[#allocation4 + $0x6] sm:$0x3]
      %v969 = vsel %vm944, %v968, -inf
      %v970 = vrot.slane %v969, 4
      %v971 = vmax.f32 %v969, %v970
      %v972 = vrot.slane %v971, 2
      %v973 = vmax.f32 %v971, %v972
      %v974 = vrot.slane %v973, 1
      %v975 = vmax.f32 %v973, %v974
      %v976 = vld [vmem:[#allocation4 + $0x8] sm:$0x3]
      %v977 = vsel %vm944, %v976, -inf
      %v978 = vrot.slane %v977, 4
      %v979 = vmax.f32 %v977, %v978
      %v980 = vrot.slane %v979, 2
      %v981 = vmax.f32 %v979, %v980
      %v982 = vrot.slane %v981, 1
      %v983 = vmax.f32 %v981, %v982
      %v984 = vld [vmem:[#allocation4 + $0xa] sm:$0x3]
      %v985 = vsel %vm944, %v984, -inf
      %v986 = vrot.slane %v985, 4
      %v987 = vmax.f32 %v985, %v986
      %v988 = vrot.slane %v987, 2
      %v989 = vmax.f32 %v987, %v988
      %v990 = vrot.slane %v989, 1
      %v991 = vmax.f32 %v989, %v990
      %v992 = vld [vmem:[#allocation4 + $0xc] sm:$0x3]
      %v993 = vsel %vm944, %v992, -inf
      %v994 = vrot.slane %v993, 4
      %v995 = vmax.f32 %v993, %v994
      %v996 = vrot.slane %v995, 2
      %v997 = vmax.f32 %v995, %v996
      %v998 = vrot.slane %v997, 1
      %v999 = vmax.f32 %v997, %v998
      %v1000 = vld [vmem:[#allocation4 + $0xe] sm:$0x3]
      %v1001 = vsel %vm944, %v1000, -inf
      %v1002 = vrot.slane %v1001, 4
      %v1003 = vmax.f32 %v1001, %v1002
      %v1004 = vrot.slane %v1003, 2
      %v1005 = vmax.f32 %v1003, %v1004
      %v1006 = vrot.slane %v1005, 1
      %v1007 = vmax.f32 %v1005, %v1006
      %1009 = vrot.lane.b32.xlu0 %v959, 32
      %v1010 = vpop.permute.xlu0 %1009
      %1013 = vrot.lane.b32.xlu0 %v967, 64
      %v1014 = vpop.permute.xlu0 %1013
      %1017 = vrot.lane.b32.xlu0 %v975, 96
      %v1018 = vpop.permute.xlu0 %1017
      %v1020 = vsel %vm940, %v951, %v1010
      %v1021 = vsel %vm522, %v1020, %v1014
      %vm1022 = vcmask 785408
      %v1023 = vsel %vm1022, %v1021, %v1018
      %1025 = vrot.lane.b32.xlu0 %v991, 32
      %v1026 = vpop.permute.xlu0 %1025
      %1029 = vrot.lane.b32.xlu0 %v999, 64
      %v1030 = vpop.permute.xlu0 %1029
      %1033 = vrot.lane.b32.xlu0 %v1007, 96
      %v1034 = vpop.permute.xlu0 %1033
      %v1036 = vsel %vm940, %v983, %v1026
      %v1037 = vsel %vm522, %v1036, %v1030
      %v1038 = vsel %vm1022, %v1037, %v1034
      %v1040 = vrot.slane %v1038, 7
      %v1042 = vsel %vm656, %v1023, %v1040
      %v1043 = vpack.c.bf16 %v1042, %v1042
      %v1044 = vld [vmem:[%s5] sm:$0xf]
      %v1045 = vld [vmem:[%s5 + $0x4] sm:$0xf]
      %v1046 = vld [vmem:[%s5 + $0x8] sm:$0xf]
      %v1047 = vld [vmem:[%s5 + $0xc] sm:$0xf]
      %v1048 = vld [vmem:[%s5 + $0x10] sm:$0xf]
      %v1049 = vld [vmem:[%s5 + $0x14] sm:$0xf]
      %v1050 = vld [vmem:[%s5 + $0x18] sm:$0xf]
      %v1051 = vld [vmem:[%s5 + $0x1c] sm:$0xf]
      %v1052 = vld [vmem:[%s5 + $0x20] sm:$0xf]
      %v1053 = vld [vmem:[%s5 + $0x24] sm:$0xf]
      %v1054 = vld [vmem:[%s5 + $0x28] sm:$0xf]
      %v1055 = vld [vmem:[%s5 + $0x2c] sm:$0xf]
      %v1056 = vld [vmem:[%s5 + $0x30] sm:$0xf]
      %v1057 = vld [vmem:[%s5 + $0x34] sm:$0xf]
      %v1058 = vld [vmem:[%s5 + $0x38] sm:$0xf]
      %v1059 = vld [vmem:[%s5 + $0x3c] sm:$0xf]
      %v1060 = vld [vmem:[%s6] sm:$0x1]
      %v1062 = vlaneseq
      %v1063 = vshrl.u32 %v1062, 7
      %v1064 = vsub.s32 0, %v1063
      %v1065 = vrot.slane %v1060, %v1064
      %v1083 = vunpack.c.l.b16 %v1044
      %v1084 = vunpack.c.l.b16 %v1045
      %v1085 = vunpack.c.l.b16 %v1046
      %v1086 = vunpack.c.l.b16 %v1047
      %v1087 = vunpack.c.l.b16 %v1048
      %v1088 = vunpack.c.l.b16 %v1049
      %v1089 = vunpack.c.l.b16 %v1050
      %v1090 = vunpack.c.l.b16 %v1051
      %v1091 = vunpack.c.l.b16 %v1052
      %v1092 = vunpack.c.l.b16 %v1053
      %v1093 = vunpack.c.l.b16 %v1054
      %v1094 = vunpack.c.l.b16 %v1055
      %v1095 = vunpack.c.l.b16 %v1056
      %v1096 = vunpack.c.l.b16 %v1057
      %v1097 = vunpack.c.l.b16 %v1058
      %v1098 = vunpack.c.l.b16 %v1059
      %v1099 = vpack.c.b16 %v1084, %v1083
      %v1100 = vpack.c.b16 %v1086, %v1085
      %v1101 = vpack.c.b16 %v1088, %v1087
      %v1102 = vpack.c.b16 %v1090, %v1089
      %v1103 = vpack.c.b16 %v1092, %v1091
      %v1104 = vpack.c.b16 %v1094, %v1093
      %v1105 = vpack.c.b16 %v1096, %v1095
      %v1106 = vpack.c.b16 %v1098, %v1097
      %1115 = vmatprep.subr.bf16.mxu0 0
      %1116 = vmatpush1.bf16.msra.mxu0 %v1106
      %1117 = vmatprep.subr.bf16.mxu0 0
      %1118 = vmatpush1.bf16.msra.mxu0 %v1105
      %1119 = vmatprep.subr.bf16.mxu0 0
      %1120 = vmatpush1.bf16.msra.mxu0 %v1104
      %1121 = vmatprep.subr.bf16.mxu0 0
      %1122 = vmatpush1.bf16.msra.mxu0 %v1103
      %1123 = vmatprep.subr.bf16.mxu0 0
      %1124 = vmatpush1.bf16.msra.mxu0 %v1102
      %1125 = vmatprep.subr.bf16.mxu0 0
      %1126 = vmatpush1.bf16.msra.mxu0 %v1101
      %1127 = vmatprep.subr.bf16.mxu0 0
      %1128 = vmatpush1.bf16.msra.mxu0 %v1100
      %1129 = vmatprep.subr.bf16.mxu0 0
      %1130 = vmatpush1.bf16.msra.mxu0 %v1099
      %1131 = vmatprep.subr.bf16.mxu0 0
      %1132 = vmatpush2.bf16.msra.mxu0 0
      %1133 = vmatprep.subr.bf16.mxu0 0
      %1134 = vmatpush2.bf16.msra.mxu0 0
      %1135 = vmatprep.subr.bf16.mxu0 0
      %1136 = vmatpush2.bf16.msra.mxu0 0
      %1137 = vmatprep.subr.bf16.mxu0 0
      %1138 = vmatpush2.bf16.msra.mxu0 0
      %1139 = vmatprep.subr.bf16.mxu0 0
      %1140 = vmatpush2.bf16.msra.mxu0 0
      %1141 = vmatprep.subr.bf16.mxu0 0
      %1142 = vmatpush2.bf16.msra.mxu0 0
      %1143 = vmatprep.subr.bf16.mxu0 0
      %1144 = vmatpush2.bf16.msra.mxu0 0
      %1145 = vmatprep.subr.bf16.mxu0 0
      %1146 = vmatpush2.bf16.msra.mxu0 0
      %1147 = vmatprep.mubr.bf16.mxu0 0
      %1148 = vmatmul.mubr.bf16.gmra.mxu0 %v1043
      %v1149 = vpop.f32.mrf.mxu0
      %v1150 = vadd.f32 %v1065, %v1149
      %v1151 = vpop.f32.mrf.mxu0
      %v1152 = vpop.f32.mrf.mxu0
      %v1153 = vpop.f32.mrf.mxu0
      %1154 = vdwg.mxu0
      %v1155 = vlaneseq
      %v1156 = vshrl.u32 %v1155, 7
      %vm1157 = vcmp.eq.s32.totalorder %v1156, 0
      %v1158 = vsel %vm1157, 1.0, -1.0
      %v1159 = vmul.f32 %v1150, %v1158
      %v1160 = vsel %vm944, %v1159, 0.0
      %v1161 = vrot.slane %v1160, 4
      %v1162 = vadd.f32 %v1160, %v1161
      %v1163 = vrot.slane %v1162, 2
      %v1164 = vadd.f32 %v1162, %v1163
      %v1165 = vrot.slane %v1164, 1
      %v1166 = vadd.f32 %v1164, %v1165
      %v1167 = vsel %vm658, %v1150, %v1166
      %vm1168 = vcmask 256000
      %1169 = vst.msk [vmem:[%s276] sm:$0x7] %vm1168, %v1167
      %p1170 = scmp.lt.s32.totalorder %s18, 1
      %s1171 = scalar_select %p1170, %s18, 1
      %s1172 = smul.addr %s1171, 4
      %s1173 = scalar_lea.vmem %s7, %s1172
      // Predicated region
      $region49: #{ncnn_forward_batched.1} parent=47 // pred_check
        %p1174 = pneg %p188
      $region50: #{ncnn_forward_batched.1} parent=47 // pred_check_branch
        %1176 = sbr.rel (%p1174) target = $region52
      $region51: #{ncnn_forward_batched.1} parent=47 // pred_region
        _
      $region52: #{ncnn_forward_batched.1} parent=47 // pred_fallthru
        _
    $region48: #{ncnn_forward_batched.1} parent=5 // pred_fallthru
      _
    %p1177 = scmp.le.s32.totalorder 2, %s13
    // Predicated region
    $region53: #{ncnn_forward_batched.1} parent=5 // pred_check
      %p1178 = pneg %p1177
    $region54: #{ncnn_forward_batched.1} parent=5 // pred_check_branch
      %1180 = sbr.rel (%p1178) target = $region56
    $region55: #{ncnn_forward_batched.1} parent=5 // pred_region
      %s1181 = ssub.s32 %s13, 2
      // Predicated region
      $region57: #{ncnn_forward_batched.1} parent=55 // pred_check
        %p1182 = pneg %p194
      $region58: #{ncnn_forward_batched.1} parent=55 // pred_check_branch
        %1184 = sbr.rel (%p1182) target = $region60
      $region59: #{ncnn_forward_batched.1} parent=55 // pred_region
        %p1185 = scmp.lt.s32.totalorder %s19, 1
        %s1186 = scalar_select %p1185, %s19, 1
        %s1187 = smul.addr %s1186, 4
        %s1188 = scalar_lea.vmem %s7, %s1187
      $region60: #{ncnn_forward_batched.1} parent=55 // pred_fallthru
        _
    $region56: #{ncnn_forward_batched.1} parent=5 // pred_fallthru
      _
  $region6: #{ncnn_forward_batched.1} parent=0 // loop_footer
    %s17 = sadd.s32 1, %s13
  $region7: #{ncnn_forward_batched.1} parent=0 // loop_footer_branch
    %12 = sbr.rel target = $region3
  $region8: #{ncnn_forward_batched.1} parent=0 // loop_exit
    _

</llo_original>
